<compile_context>
chip_gen: v7x
topology: tpu7x:2x2x1
jax: 0.10.0
libtpu: 0.0.40
codegen_flags: <defaults>
</compile_context>

<pallas_src>
import functools

import jax
import jax.numpy as jnp
from jax.experimental import pallas as pl
from jax.experimental.pallas import tpu as pltpu

LANE = 128        # lane width: every feature / class dim is zero-padded to this
NODE_ALIGN = 256  # node-dim alignment (contraction depth of A@H, lane axis of A)


def _round_up(x, m):
    return (x + m - 1) // m * m


def _act(v, activation):
    if activation == "relu":
        return jnp.maximum(v, 0.0)
    if activation == "tanh":
        return jnp.tanh(v)
    if activation == "leaky_relu":
        return jnp.where(v > 0, v, 0.01 * v)
    return v


def _vmem_limit_bytes():
    """Generation-aware VMEM cap (leave headroom for compiler scratch)."""
    try:
        cap = int(getattr(pltpu.get_tpu_info(), "vmem_capacity_bytes",
                          64 * 1024 * 1024))
    except Exception:
        cap = 64 * 1024 * 1024
    return max(32 * 1024 * 1024, min(cap * 3 // 4, 100 * 1024 * 1024))


# ---------------------------------------------------------------------------
# Fused whole-graph kernel (small / medium N: dense A_hat resident in VMEM)
# ---------------------------------------------------------------------------
def _gcn_fused_kernel(*refs, activation, n_convs):
    """refs = (a, x, w0, b0, ..., w_{L-1}, b_{L-1}, wc, bc, out)."""
    a_ref, x_ref = refs[0], refs[1]
    o_ref = refs[-1]
    wb = refs[2:-1]

    a = a_ref[...]   # [Np, Np]   bf16
    h = x_ref[...]   # [Np, LANE] bf16

    for li in range(n_convs):
        w = wb[2 * li][...]        # [LANE, LANE] bf16 (zero padded)
        b = wb[2 * li + 1][...]    # [1, LANE]    f32  (zero padded)
        # GCNConv reference order: propagate(A_hat, X @ W) + b.
        hw = jnp.dot(h, w, preferred_element_type=jnp.float32)
        h32 = jnp.dot(a, hw.astype(jnp.bfloat16),
                      preferred_element_type=jnp.float32)
        h32 = _act(h32 + b, activation)
        # dropout(p, training=False) -> identity (eval mode).
        h = h32.astype(jnp.bfloat16)

    wc = wb[2 * n_convs][...]      # [LANE, LANE] bf16
    bc = wb[2 * n_convs + 1][...]  # [1, LANE]    f32
    out = jnp.dot(h, wc, preferred_element_type=jnp.float32) + bc
    o_ref[...] = out.astype(o_ref.dtype)   # lane-dense [Np, 128] store


def _gcn_forward_fused(a_p, x_p, flat, n, num_classes, activation, n_convs,
                       vmem_limit):
    n_pad = a_p.shape[0]

    def full(shape):
        return pl.BlockSpec(shape, lambda: (0,) * len(shape))

    in_specs = [full(a_p.shape), full(x_p.shape)] + [full(arr.shape)
                                                     for arr in flat]

    flops = (2 * n_convs * (n_pad * n_pad * LANE + n_pad * LANE * LANE)
             + 2 * n_pad * LANE * LANE)
    transcendentals = n_pad * LANE * n_convs if activation == "tanh" else 0
    bytes_accessed = int(a_p.size * 2 + x_p.size * 2
                         + sum(arr.size * arr.dtype.itemsize for arr in flat)
                         + n_pad * LANE * 4)

    out_p = pl.pallas_call(
        functools.partial(_gcn_fused_kernel, activation=activation,
                          n_convs=n_convs),
        out_shape=jax.ShapeDtypeStruct((n_pad, LANE), jnp.float32),
        in_specs=in_specs,
        out_specs=full((n_pad, LANE)),
        compiler_params=pltpu.CompilerParams(vmem_limit_bytes=vmem_limit),
        cost_estimate=pl.CostEstimate(flops=int(flops),
                                      transcendentals=int(transcendentals),
                                      bytes_accessed=bytes_accessed),
    )(a_p, x_p, *flat)

    return out_p[:n, :num_classes]


# ---------------------------------------------------------------------------
# Tiled aggregation kernel (large N: dense A_hat streamed from HBM)
# ---------------------------------------------------------------------------
def _agg_tiled_kernel(a_ref, hw_ref, b_ref, o_ref, acc_ref, *, activation):
    k = pl.program_id(1)

    @pl.when(k == 0)
    def _():
        acc_ref[...] = jnp.zeros_like(acc_ref)

    acc_ref[...] += jnp.dot(a_ref[...], hw_ref[...],
                            preferred_element_type=jnp.float32)

    @pl.when(k == pl.num_programs(1) - 1)
    def _():
        o_ref[...] = _act(acc_ref[...] + b_ref[...],
                          activation).astype(o_ref.dtype)


def _aggregate_tiled(a_p, hw_p, b_p, activation, tile, vmem_limit):
    n_pad = a_p.shape[0]
    grid = (n_pad // tile, n_pad // tile)
    flops = 2 * n_pad * n_pad * LANE
    bytes_accessed = int(a_p.size * 2 + hw_p.size * 2 * grid[0]
                         + n_pad * LANE * 4)
    return pl.pallas_call(
        functools.partial(_agg_tiled_kernel, activation=activation),
        out_shape=jax.ShapeDtypeStruct((n_pad, LANE), jnp.float32),
        grid_spec=pltpu.PrefetchScalarGridSpec(
            num_scalar_prefetch=0,
            grid=grid,
            in_specs=[
                pl.BlockSpec((tile, tile), lambda i, k: (i, k)),   # A_hat
                pl.BlockSpec((tile, LANE), lambda i, k: (k, 0)),   # H @ W
                pl.BlockSpec((1, LANE), lambda i, k: (0, 0)),      # bias
            ],
            out_specs=pl.BlockSpec((tile, LANE), lambda i, k: (i, 0)),
            scratch_shapes=[pltpu.VMEM((tile, LANE), jnp.float32)],
        ),
        compiler_params=pltpu.CompilerParams(
            dimension_semantics=("parallel", "arbitrary"),
            vmem_limit_bytes=vmem_limit),
        cost_estimate=pl.CostEstimate(flops=int(flops), transcendentals=0,
                                      bytes_accessed=bytes_accessed),
    )(a_p, hw_p, b_p)


# ---------------------------------------------------------------------------
# Wrapper: pad, cast, pick dense-fused vs tiled path
# ---------------------------------------------------------------------------
def gcn_forward(x, a_hat, conv_params, classifier_params, activation,
                force_tiled=False):
    n, _ = x.shape
    n_convs = len(conv_params)
    num_classes = classifier_params[0].shape[1]

    n_pad = max(NODE_ALIGN, _round_up(n, NODE_ALIGN))

    def pad2(m, rows, cols):
        return jnp.pad(m, ((0, rows - m.shape[0]), (0, cols - m.shape[1])))

    a_p = pad2(a_hat, n_pad, n_pad).astype(jnp.bfloat16)
    x_p = pad2(x, n_pad, LANE).astype(jnp.bfloat16)

    flat = []
    for w, b in list(conv_params) + [classifier_params]:
        flat.append(pad2(w, LANE, LANE).astype(jnp.bfloat16))
        flat.append(jnp.pad(b, (0, LANE - b.shape[0]))
                    .reshape(1, LANE).astype(jnp.float32))

    vmem_limit = _vmem_limit_bytes()

    # Rough dense-residency estimate (A_hat + X + f32 intermediates + output
    # + weights) with 2x headroom for compiler scratch / buffering.
    dense_bytes = (a_p.size * 2 + x_p.size * 2 + 3 * n_pad * LANE * 4
                   + sum(arr.size * arr.dtype.itemsize for arr in flat))

    if not force_tiled and 2 * dense_bytes <= vmem_limit:
        return _gcn_forward_fused(a_p, x_p, flat, n, num_classes, activation,
                                  n_convs, vmem_limit)

    # Large-N fallback: per-layer tiled aggregation. The [N,128]x[128,128]
    # feature transforms / classifier are negligible and stay in XLA.
    tile = NODE_ALIGN
    h = x_p
    for li in range(n_convs):
        w, b = flat[2 * li], flat[2 * li + 1]
        hw = jnp.dot(h, w, preferred_element_type=jnp.float32
                     ).astype(jnp.bfloat16)
        h = _aggregate_tiled(a_p, hw, b, activation, tile,
                             vmem_limit).astype(jnp.bfloat16)
    wc, bc = flat[2 * n_convs], flat[2 * n_convs + 1]
    out = jnp.dot(h, wc, preferred_element_type=jnp.float32) + bc
    return out[:n, :num_classes]


# ---------------------------------------------------------------------------
# Plain-JAX glue
# ---------------------------------------------------------------------------
def build_a_hat(edge_index, num_nodes):
    """Dense symmetric-normalized adjacency with self-loops (GCNConv gcn_norm)."""
    src, dst = edge_index[0], edge_index[1]
    a = jnp.zeros((num_nodes, num_nodes), jnp.float32).at[dst, src].add(1.0)
    a = a + jnp.eye(num_nodes, dtype=jnp.float32)
    deg = a.sum(axis=1)
    d_inv_sqrt = jax.lax.rsqrt(deg)
    return a * d_inv_sqrt[:, None] * d_inv_sqrt[None, :]


def init_params(key, num_features, num_classes, layer_dims):
    """Deterministic glorot-style init for GCNConv weights + Linear classifier."""
    dims = [num_features] + layer_dims
    params = []
    for i in range(len(dims) - 1):
        key, wk = jax.random.split(key)
        fan_in, fan_out = dims[i], dims[i + 1]
        scale = jnp.sqrt(6.0 / (fan_in + fan_out))
        w = jax.random.uniform(wk, (fan_in, fan_out), jnp.float32, -scale, scale)
        b = jnp.zeros((fan_out,), jnp.float32)
        params.append((w, b))
    key, ck = jax.random.split(key)
    fan_in = layer_dims[-1]
    scale = 1.0 / jnp.sqrt(fan_in)
    # torch Linear weight is [out, in]; store transposed [in, out] for the kernel.
    wc_t = jax.random.uniform(ck, (fan_in, num_classes), jnp.float32, -scale, scale)
    bc = jax.random.uniform(key, (num_classes,), jnp.float32, -scale, scale)
    return params, (wc_t, bc)


# ---------------------------------------------------------------------------
# Main
# ---------------------------------------------------------------------------
if __name__ == "__main__":
    # config mirroring the torch module (GCN conv path)
    config = {
        "n_layers": 4,
        "channel_increase": 2,
        "dropout": 0.5,
        "activation": "relu",
        "conv_type": "GCN",
    }
    num_nodes = 32
    num_features = 8
    num_classes = 3

    # layer_dims = [c**i for i in range(2, n_layers//2 + 2)] mirrored -> [4, 8, 8, 4]
    half = [config["channel_increase"] ** i
            for i in range(2, config["n_layers"] // 2 + 2)]
    layer_dims = half + half[::-1]

    key = jax.random.PRNGKey(0)
    key, xk = jax.random.split(key)
    x = jax.random.normal(xk, (num_nodes, num_features), jnp.float32)

    # deterministic graph: bidirectional ring over num_nodes nodes
    idx = jnp.arange(num_nodes, dtype=jnp.int32)
    src = jnp.concatenate([idx, (idx + 1) % num_nodes])
    dst = jnp.concatenate([(idx + 1) % num_nodes, idx])
    edge_index = jnp.stack([src, dst])  # [2, 2*num_nodes]

    a_hat = build_a_hat(edge_index, num_nodes)
    conv_params, classifier_params = init_params(
        key, num_features, num_classes, layer_dims
    )

    # Primary fused path.
    out = gcn_forward(x, a_hat, conv_params, classifier_params,
                      config["activation"])
    out = jax.block_until_ready(out)
    assert out.shape == (num_nodes, num_classes), out.shape
    assert bool(jnp.all(jnp.isfinite(out)))

    # Smoke-test the large-N tiled fallback on the same inputs (grid (1,1)).
    out_tiled = gcn_forward(x, a_hat, conv_params, classifier_params,
                            config["activation"], force_tiled=True)
    out_tiled = jax.block_until_ready(out_tiled)
    assert out_tiled.shape == (num_nodes, num_classes), out_tiled.shape
    assert bool(jnp.allclose(out, out_tiled, atol=5e-2, rtol=5e-2))

    print("KERNEL_OK")
</pallas_src>

<mosaic_0001>
module attributes {stable_mosaic.version = 11 : i64} {
  func.func @_gcn_fused_kernel(%arg0: memref<256x256xbf16, #tpu.memory_space<vmem>>, %arg1: memref<256x128xbf16, #tpu.memory_space<vmem>>, %arg2: memref<128x128xbf16, #tpu.memory_space<vmem>>, %arg3: memref<1x128xf32, #tpu.memory_space<vmem>>, %arg4: memref<128x128xbf16, #tpu.memory_space<vmem>>, %arg5: memref<1x128xf32, #tpu.memory_space<vmem>>, %arg6: memref<128x128xbf16, #tpu.memory_space<vmem>>, %arg7: memref<1x128xf32, #tpu.memory_space<vmem>>, %arg8: memref<128x128xbf16, #tpu.memory_space<vmem>>, %arg9: memref<1x128xf32, #tpu.memory_space<vmem>>, %arg10: memref<128x128xbf16, #tpu.memory_space<vmem>>, %arg11: memref<1x128xf32, #tpu.memory_space<vmem>>, %arg12: memref<256x128xf32, #tpu.memory_space<vmem>>) attributes {dimension_semantics = [], scalar_prefetch = 0 : i64, scratch_operands = 0 : i64, tpu.core_type = #tpu.core_type<tc>} {
    %c0 = arith.constant 0 : index
    %c0_0 = arith.constant 0 : index
    %0 = vector.load %arg0[%c0, %c0_0] : memref<256x256xbf16, #tpu.memory_space<vmem>>, vector<256x256xbf16>
    %c0_1 = arith.constant 0 : index
    %c0_2 = arith.constant 0 : index
    %1 = vector.load %arg1[%c0_1, %c0_2] : memref<256x128xbf16, #tpu.memory_space<vmem>>, vector<256x128xbf16>
    %c0_3 = arith.constant 0 : index
    %c0_4 = arith.constant 0 : index
    %2 = vector.load %arg2[%c0_3, %c0_4] : memref<128x128xbf16, #tpu.memory_space<vmem>>, vector<128x128xbf16>
    %c0_5 = arith.constant 0 : index
    %c0_6 = arith.constant 0 : index
    %3 = vector.load %arg3[%c0_5, %c0_6] : memref<1x128xf32, #tpu.memory_space<vmem>>, vector<1x128xf32>
    %cst = arith.constant dense<0.000000e+00> : vector<256x128xf32>
    %4 = tpu.matmul %1, %2, %cst {dimension_numbers = #tpu.dot_dimension_numbers<[1], [0], [0], [1], [0, 0, 1, 1], [], []>} : vector<256x128xbf16>, vector<128x128xbf16>, vector<256x128xf32> -> vector<256x128xf32>
    %5 = arith.truncf %4 : vector<256x128xf32> to vector<256x128xbf16>
    %cst_7 = arith.constant dense<0.000000e+00> : vector<256x128xf32>
    %6 = tpu.matmul %0, %5, %cst_7 {dimension_numbers = #tpu.dot_dimension_numbers<[1], [0], [0], [1], [0, 0, 1, 1], [], []>} : vector<256x256xbf16>, vector<256x128xbf16>, vector<256x128xf32> -> vector<256x128xf32>
    %7 = vector.broadcast %3 : vector<1x128xf32> to vector<256x128xf32>
    %8 = arith.addf %6, %7 : vector<256x128xf32>
    %cst_8 = arith.constant 0.000000e+00 : f32
    %9 = vector.broadcast %cst_8 : f32 to vector<256x128xf32>
    %10 = arith.maximumf %8, %9 : vector<256x128xf32>
    %11 = arith.truncf %10 : vector<256x128xf32> to vector<256x128xbf16>
    %c0_9 = arith.constant 0 : index
    %c0_10 = arith.constant 0 : index
    %12 = vector.load %arg4[%c0_9, %c0_10] : memref<128x128xbf16, #tpu.memory_space<vmem>>, vector<128x128xbf16>
    %c0_11 = arith.constant 0 : index
    %c0_12 = arith.constant 0 : index
    %13 = vector.load %arg5[%c0_11, %c0_12] : memref<1x128xf32, #tpu.memory_space<vmem>>, vector<1x128xf32>
    %cst_13 = arith.constant dense<0.000000e+00> : vector<256x128xf32>
    %14 = tpu.matmul %11, %12, %cst_13 {dimension_numbers = #tpu.dot_dimension_numbers<[1], [0], [0], [1], [0, 0, 1, 1], [], []>} : vector<256x128xbf16>, vector<128x128xbf16>, vector<256x128xf32> -> vector<256x128xf32>
    %15 = arith.truncf %14 : vector<256x128xf32> to vector<256x128xbf16>
    %cst_14 = arith.constant dense<0.000000e+00> : vector<256x128xf32>
    %16 = tpu.matmul %0, %15, %cst_14 {dimension_numbers = #tpu.dot_dimension_numbers<[1], [0], [0], [1], [0, 0, 1, 1], [], []>} : vector<256x256xbf16>, vector<256x128xbf16>, vector<256x128xf32> -> vector<256x128xf32>
    %17 = vector.broadcast %13 : vector<1x128xf32> to vector<256x128xf32>
    %18 = arith.addf %16, %17 : vector<256x128xf32>
    %cst_15 = arith.constant 0.000000e+00 : f32
    %19 = vector.broadcast %cst_15 : f32 to vector<256x128xf32>
    %20 = arith.maximumf %18, %19 : vector<256x128xf32>
    %21 = arith.truncf %20 : vector<256x128xf32> to vector<256x128xbf16>
    %c0_16 = arith.constant 0 : index
    %c0_17 = arith.constant 0 : index
    %22 = vector.load %arg6[%c0_16, %c0_17] : memref<128x128xbf16, #tpu.memory_space<vmem>>, vector<128x128xbf16>
    %c0_18 = arith.constant 0 : index
    %c0_19 = arith.constant 0 : index
    %23 = vector.load %arg7[%c0_18, %c0_19] : memref<1x128xf32, #tpu.memory_space<vmem>>, vector<1x128xf32>
    %cst_20 = arith.constant dense<0.000000e+00> : vector<256x128xf32>
    %24 = tpu.matmul %21, %22, %cst_20 {dimension_numbers = #tpu.dot_dimension_numbers<[1], [0], [0], [1], [0, 0, 1, 1], [], []>} : vector<256x128xbf16>, vector<128x128xbf16>, vector<256x128xf32> -> vector<256x128xf32>
    %25 = arith.truncf %24 : vector<256x128xf32> to vector<256x128xbf16>
    %cst_21 = arith.constant dense<0.000000e+00> : vector<256x128xf32>
    %26 = tpu.matmul %0, %25, %cst_21 {dimension_numbers = #tpu.dot_dimension_numbers<[1], [0], [0], [1], [0, 0, 1, 1], [], []>} : vector<256x256xbf16>, vector<256x128xbf16>, vector<256x128xf32> -> vector<256x128xf32>
    %27 = vector.broadcast %23 : vector<1x128xf32> to vector<256x128xf32>
    %28 = arith.addf %26, %27 : vector<256x128xf32>
    %cst_22 = arith.constant 0.000000e+00 : f32
    %29 = vector.broadcast %cst_22 : f32 to vector<256x128xf32>
    %30 = arith.maximumf %28, %29 : vector<256x128xf32>
    %31 = arith.truncf %30 : vector<256x128xf32> to vector<256x128xbf16>
    %c0_23 = arith.constant 0 : index
    %c0_24 = arith.constant 0 : index
    %32 = vector.load %arg8[%c0_23, %c0_24] : memref<128x128xbf16, #tpu.memory_space<vmem>>, vector<128x128xbf16>
    %c0_25 = arith.constant 0 : index
    %c0_26 = arith.constant 0 : index
    %33 = vector.load %arg9[%c0_25, %c0_26] : memref<1x128xf32, #tpu.memory_space<vmem>>, vector<1x128xf32>
    %cst_27 = arith.constant dense<0.000000e+00> : vector<256x128xf32>
    %34 = tpu.matmul %31, %32, %cst_27 {dimension_numbers = #tpu.dot_dimension_numbers<[1], [0], [0], [1], [0, 0, 1, 1], [], []>} : vector<256x128xbf16>, vector<128x128xbf16>, vector<256x128xf32> -> vector<256x128xf32>
    %35 = arith.truncf %34 : vector<256x128xf32> to vector<256x128xbf16>
    %cst_28 = arith.constant dense<0.000000e+00> : vector<256x128xf32>
    %36 = tpu.matmul %0, %35, %cst_28 {dimension_numbers = #tpu.dot_dimension_numbers<[1], [0], [0], [1], [0, 0, 1, 1], [], []>} : vector<256x256xbf16>, vector<256x128xbf16>, vector<256x128xf32> -> vector<256x128xf32>
    %37 = vector.broadcast %33 : vector<1x128xf32> to vector<256x128xf32>
    %38 = arith.addf %36, %37 : vector<256x128xf32>
    %cst_29 = arith.constant 0.000000e+00 : f32
    %39 = vector.broadcast %cst_29 : f32 to vector<256x128xf32>
    %40 = arith.maximumf %38, %39 : vector<256x128xf32>
    %41 = arith.truncf %40 : vector<256x128xf32> to vector<256x128xbf16>
    %c0_30 = arith.constant 0 : index
    %c0_31 = arith.constant 0 : index
    %42 = vector.load %arg10[%c0_30, %c0_31] : memref<128x128xbf16, #tpu.memory_space<vmem>>, vector<128x128xbf16>
    %c0_32 = arith.constant 0 : index
    %c0_33 = arith.constant 0 : index
    %43 = vector.load %arg11[%c0_32, %c0_33] : memref<1x128xf32, #tpu.memory_space<vmem>>, vector<1x128xf32>
    %cst_34 = arith.constant dense<0.000000e+00> : vector<256x128xf32>
    %44 = tpu.matmul %41, %42, %cst_34 {dimension_numbers = #tpu.dot_dimension_numbers<[1], [0], [0], [1], [0, 0, 1, 1], [], []>} : vector<256x128xbf16>, vector<128x128xbf16>, vector<256x128xf32> -> vector<256x128xf32>
    %45 = vector.broadcast %43 : vector<1x128xf32> to vector<256x128xf32>
    %46 = arith.addf %44, %45 : vector<256x128xf32>
    %c0_35 = arith.constant 0 : index
    %c0_36 = arith.constant 0 : index
    %47 = vector.load %arg12[%c0_35, %c0_36] : memref<256x128xf32, #tpu.memory_space<vmem>>, vector<256x128xf32>
    tpu.vector_store %arg12[%c0_35, %c0_36], %46 {strides = array<i32>} : memref<256x128xf32, #tpu.memory_space<vmem>>, vector<256x128xf32>,
    return
  }
}

</mosaic_0001>

<llo_original>
// kernel: tpu_custom_call.1
$region0: #{tpu_custom_call.1}
  #allocation0 [shape = 'u32[]', space=smem, size = 0x4, offset = 0x4, fixed_abs, tag = 'smem constant byte address 0x4 - core index']
  #allocation1 [shape = 'u32[144,128]{1,0:T(1,128)}', space=vmem, size = 0x12000, scoped, tag = 'internal scratch']
  %s0 = inlined_call_operand.hbm [shape: bf16[256,256], index: 0, kind: input, shape index: {}]
  %s1 = inlined_call_operand.hbm [shape: bf16[256,128], index: 1, kind: input, shape index: {}]
  %s2 = inlined_call_operand.hbm [shape: bf16[128,128], index: 2, kind: input, shape index: {}]
  %s3 = inlined_call_operand.vmem [shape: f32[1,128], index: 3, kind: input, shape index: {}]
  %s4 = inlined_call_operand.hbm [shape: bf16[128,128], index: 4, kind: input, shape index: {}]
  %s5 = inlined_call_operand.vmem [shape: f32[1,128], index: 5, kind: input, shape index: {}]
  %s6 = inlined_call_operand.hbm [shape: bf16[128,128], index: 6, kind: input, shape index: {}]
  %s7 = inlined_call_operand.vmem [shape: f32[1,128], index: 7, kind: input, shape index: {}]
  %s8 = inlined_call_operand.hbm [shape: bf16[128,128], index: 8, kind: input, shape index: {}]
  %s9 = inlined_call_operand.vmem [shape: f32[1,128], index: 9, kind: input, shape index: {}]
  %s10 = inlined_call_operand.hbm [shape: bf16[128,128], index: 10, kind: input, shape index: {}]
  %s11 = inlined_call_operand.vmem [shape: f32[1,128], index: 11, kind: input, shape index: {}]
  %s12 = inlined_call_operand.hbm [shape: f32[256,128], index: 12, kind: output, shape index: {}]
  %s13 = sld [smem:[#allocation0]]
  $region86: #{tpu_custom_call.1} parent=0
    _
  %s15 = ssub.s32 1, %s13
  %s16 = scalar_select 0, %s15, %s13
  $region1: #{tpu_custom_call.1} parent=0
    #allocation2 [shape = 'u8[131072]{0}', space=vmem, size = 0x20000, scoped, tag = 'input window, operand 0, single buffered']
    #allocation3 [shape = 's32[1]{0}', space=sflag, size = 0x4, scoped, tag = 'scoped memory for tpu_custom_call.1']
    #allocation4 [shape = 's32[1]{0}', space=sflag, size = 0x4, scoped, tag = 'scoped memory for tpu_custom_call.1']
    #allocation5 [shape = 'u8[65536]{0}', space=vmem, size = 0x10000, scoped, tag = 'input window, operand 1, single buffered']
    #allocation6 [shape = 's32[1]{0}', space=sflag, size = 0x4, scoped, tag = 'scoped memory for tpu_custom_call.1']
    #allocation7 [shape = 'u8[32768]{0}', space=vmem, size = 0x8000, scoped, tag = 'input window, operand 2, single buffered']
    #allocation8 [shape = 'u8[32768]{0}', space=vmem, size = 0x8000, scoped, tag = 'input window, operand 4, single buffered']
    #allocation9 [shape = 's32[1]{0}', space=sflag, size = 0x4, scoped, tag = 'scoped memory for tpu_custom_call.1']
    #allocation10 [shape = 'u8[32768]{0}', space=vmem, size = 0x8000, scoped, tag = 'input window, operand 6, single buffered']
    #allocation11 [shape = 'u8[32768]{0}', space=vmem, size = 0x8000, scoped, tag = 'input window, operand 8, single buffered']
    #allocation12 [shape = 's32[1]{0}', space=sflag, size = 0x4, scoped, tag = 'scoped memory for tpu_custom_call.1']
    #allocation13 [shape = 'u8[32768]{0}', space=vmem, size = 0x8000, scoped, tag = 'input window, operand 10, single buffered']
    #allocation14 [shape = 'u8[131072]{0}', space=vmem, size = 0x20000, scoped, tag = 'output window, operand 0, single buffered']
    %17 = vsyncpa [#allocation3], 0
    %18 = vsyncpa [#allocation6], 0
    %19 = vsyncpa [#allocation9], 0
    %20 = vsyncpa [#allocation12], 0
    %21 = vsyncpa [#allocation4], 0
    // Predicated region
    $region2: #{tpu_custom_call.1} parent=1 // pred_check
      _
    $region3: #{tpu_custom_call.1} parent=1 // pred_check_branch
      %23 = sbr.rel (0) target = $region5
    $region4: #{tpu_custom_call.1} parent=1 // pred_region
      %s25 = ssub.s32 4096, 4096
      %26 = vsyncadd [#allocation3], %s25
      %s27 = sshll.u32 [#allocation2], 4
      %s28 = int_to_ptr.vmem [resolvable:$true] %s27
      %33 = dma.hbm_to_vmem [thread:$0]  %s0, 4096, %s28, [#allocation3], 128, 128, 8
    $region5: #{tpu_custom_call.1} parent=1 // pred_fallthru
      _
    // Predicated region
    $region6: #{tpu_custom_call.1} parent=1 // pred_check
      _
    $region7: #{tpu_custom_call.1} parent=1 // pred_check_branch
      %35 = sbr.rel (0) target = $region9
    $region8: #{tpu_custom_call.1} parent=1 // pred_region
      %s37 = ssub.s32 2048, 2048
      %38 = vsyncadd [#allocation6], %s37
      %s39 = sshll.u32 [#allocation5], 4
      %s40 = int_to_ptr.vmem [resolvable:$true] %s39
      %45 = dma.hbm_to_vmem [thread:$0]  %s1, 2048, %s40, [#allocation6], 64, 64, 4
    $region9: #{tpu_custom_call.1} parent=1 // pred_fallthru
      _
    // Predicated region
    $region10: #{tpu_custom_call.1} parent=1 // pred_check
      _
    $region11: #{tpu_custom_call.1} parent=1 // pred_check_branch
      %47 = sbr.rel (0) target = $region13
    $region12: #{tpu_custom_call.1} parent=1 // pred_region
      %s49 = ssub.s32 1024, 1024
      %50 = vsyncadd [#allocation6], %s49
      %s51 = sshll.u32 [#allocation7], 4
      %s52 = int_to_ptr.vmem [resolvable:$true] %s51
      %57 = dma.hbm_to_vmem [thread:$0]  %s2, 1024, %s52, [#allocation6], 64, 64, 4
    $region13: #{tpu_custom_call.1} parent=1 // pred_fallthru
      _
    // Predicated region
    $region14: #{tpu_custom_call.1} parent=1 // pred_check
      _
    $region15: #{tpu_custom_call.1} parent=1 // pred_check_branch
      %59 = sbr.rel (0) target = $region17
    $region16: #{tpu_custom_call.1} parent=1 // pred_region
      _
    $region17: #{tpu_custom_call.1} parent=1 // pred_fallthru
      _
    // Predicated region
    $region18: #{tpu_custom_call.1} parent=1 // pred_check
      _
    $region19: #{tpu_custom_call.1} parent=1 // pred_check_branch
      %61 = sbr.rel (0) target = $region21
    $region20: #{tpu_custom_call.1} parent=1 // pred_region
      %s63 = ssub.s32 1024, 1024
      %64 = vsyncadd [#allocation9], %s63
      %s65 = sshll.u32 [#allocation8], 4
      %s66 = int_to_ptr.vmem [resolvable:$true] %s65
      %71 = dma.hbm_to_vmem [thread:$0]  %s4, 1024, %s66, [#allocation9], 64, 64, 4
    $region21: #{tpu_custom_call.1} parent=1 // pred_fallthru
      _
    // Predicated region
    $region22: #{tpu_custom_call.1} parent=1 // pred_check
      _
    $region23: #{tpu_custom_call.1} parent=1 // pred_check_branch
      %73 = sbr.rel (0) target = $region25
    $region24: #{tpu_custom_call.1} parent=1 // pred_region
      _
    $region25: #{tpu_custom_call.1} parent=1 // pred_fallthru
      _
    // Predicated region
    $region26: #{tpu_custom_call.1} parent=1 // pred_check
      _
    $region27: #{tpu_custom_call.1} parent=1 // pred_check_branch
      %75 = sbr.rel (0) target = $region29
    $region28: #{tpu_custom_call.1} parent=1 // pred_region
      %s77 = ssub.s32 1024, 1024
      %78 = vsyncadd [#allocation9], %s77
      %s79 = sshll.u32 [#allocation10], 4
      %s80 = int_to_ptr.vmem [resolvable:$true] %s79
      %85 = dma.hbm_to_vmem [thread:$0]  %s6, 1024, %s80, [#allocation9], 64, 64, 4
    $region29: #{tpu_custom_call.1} parent=1 // pred_fallthru
      _
    // Predicated region
    $region30: #{tpu_custom_call.1} parent=1 // pred_check
      _
    $region31: #{tpu_custom_call.1} parent=1 // pred_check_branch
      %87 = sbr.rel (0) target = $region33
    $region32: #{tpu_custom_call.1} parent=1 // pred_region
      _
    $region33: #{tpu_custom_call.1} parent=1 // pred_fallthru
      _
    // Predicated region
    $region34: #{tpu_custom_call.1} parent=1 // pred_check
      _
    $region35: #{tpu_custom_call.1} parent=1 // pred_check_branch
      %89 = sbr.rel (0) target = $region37
    $region36: #{tpu_custom_call.1} parent=1 // pred_region
      %s91 = ssub.s32 1024, 1024
      %92 = vsyncadd [#allocation12], %s91
      %s93 = sshll.u32 [#allocation11], 4
      %s94 = int_to_ptr.vmem [resolvable:$true] %s93
      %99 = dma.hbm_to_vmem [thread:$0]  %s8, 1024, %s94, [#allocation12], 64, 64, 4
    $region37: #{tpu_custom_call.1} parent=1 // pred_fallthru
      _
    // Predicated region
    $region38: #{tpu_custom_call.1} parent=1 // pred_check
      _
    $region39: #{tpu_custom_call.1} parent=1 // pred_check_branch
      %101 = sbr.rel (0) target = $region41
    $region40: #{tpu_custom_call.1} parent=1 // pred_region
      _
    $region41: #{tpu_custom_call.1} parent=1 // pred_fallthru
      _
    // Predicated region
    $region42: #{tpu_custom_call.1} parent=1 // pred_check
      _
    $region43: #{tpu_custom_call.1} parent=1 // pred_check_branch
      %103 = sbr.rel (0) target = $region45
    $region44: #{tpu_custom_call.1} parent=1 // pred_region
      %s105 = ssub.s32 1024, 1024
      %106 = vsyncadd [#allocation12], %s105
      %s107 = sshll.u32 [#allocation13], 4
      %s108 = int_to_ptr.vmem [resolvable:$true] %s107
      %113 = dma.hbm_to_vmem [thread:$0]  %s10, 1024, %s108, [#allocation12], 64, 64, 4
    $region45: #{tpu_custom_call.1} parent=1 // pred_fallthru
      _
    // Predicated region
    $region46: #{tpu_custom_call.1} parent=1 // pred_check
      _
    $region47: #{tpu_custom_call.1} parent=1 // pred_check_branch
      %115 = sbr.rel (0) target = $region49
    $region48: #{tpu_custom_call.1} parent=1 // pred_region
      _
    $region49: #{tpu_custom_call.1} parent=1 // pred_fallthru
      _
    // Predicated region
    $region50: #{tpu_custom_call.1} parent=1 // pred_check
      _
    $region51: #{tpu_custom_call.1} parent=1 // pred_check_branch
      %117 = sbr.rel (0) target = $region53
    $region52: #{tpu_custom_call.1} parent=1 // pred_region
      %118 = dma.done [#allocation3], 4096
    $region53: #{tpu_custom_call.1} parent=1 // pred_fallthru
      _
    // Predicated region
    $region54: #{tpu_custom_call.1} parent=1 // pred_check
      _
    $region55: #{tpu_custom_call.1} parent=1 // pred_check_branch
      %120 = sbr.rel (0) target = $region57
    $region56: #{tpu_custom_call.1} parent=1 // pred_region
      %121 = dma.done [#allocation6], 2048
    $region57: #{tpu_custom_call.1} parent=1 // pred_fallthru
      _
    // Predicated region
    $region58: #{tpu_custom_call.1} parent=1 // pred_check
      _
    $region59: #{tpu_custom_call.1} parent=1 // pred_check_branch
      %123 = sbr.rel (0) target = $region61
    $region60: #{tpu_custom_call.1} parent=1 // pred_region
      %124 = dma.done [#allocation6], 1024
    $region61: #{tpu_custom_call.1} parent=1 // pred_fallthru
      _
    // Predicated region
    $region62: #{tpu_custom_call.1} parent=1 // pred_check
      _
    $region63: #{tpu_custom_call.1} parent=1 // pred_check_branch
      %126 = sbr.rel (0) target = $region65
    $region64: #{tpu_custom_call.1} parent=1 // pred_region
      %127 = dma.done [#allocation9], 1024
    $region65: #{tpu_custom_call.1} parent=1 // pred_fallthru
      _
    // Predicated region
    $region66: #{tpu_custom_call.1} parent=1 // pred_check
      _
    $region67: #{tpu_custom_call.1} parent=1 // pred_check_branch
      %129 = sbr.rel (0) target = $region69
    $region68: #{tpu_custom_call.1} parent=1 // pred_region
      %130 = dma.done [#allocation9], 1024
    $region69: #{tpu_custom_call.1} parent=1 // pred_fallthru
      _
    // Predicated region
    $region70: #{tpu_custom_call.1} parent=1 // pred_check
      _
    $region71: #{tpu_custom_call.1} parent=1 // pred_check_branch
      %132 = sbr.rel (0) target = $region73
    $region72: #{tpu_custom_call.1} parent=1 // pred_region
      %133 = dma.done [#allocation12], 1024
    $region73: #{tpu_custom_call.1} parent=1 // pred_fallthru
      _
    // Predicated region
    $region74: #{tpu_custom_call.1} parent=1 // pred_check
      _
    $region75: #{tpu_custom_call.1} parent=1 // pred_check_branch
      %135 = sbr.rel (0) target = $region77
    $region76: #{tpu_custom_call.1} parent=1 // pred_region
      %136 = dma.done [#allocation12], 1024
    $region77: #{tpu_custom_call.1} parent=1 // pred_fallthru
      _
    %v138 = vld [vmem:[#allocation2] sm:$0xff]
    %v139 = vld [vmem:[#allocation2 + $0x8] sm:$0xff]
    %v140 = vld [vmem:[#allocation2 + $0x10] sm:$0xff]
    %v141 = vld [vmem:[#allocation2 + $0x18] sm:$0xff]
    %v142 = vld [vmem:[#allocation2 + $0x20] sm:$0xff]
    %v143 = vld [vmem:[#allocation2 + $0x28] sm:$0xff]
    %v144 = vld [vmem:[#allocation2 + $0x30] sm:$0xff]
    %v145 = vld [vmem:[#allocation2 + $0x38] sm:$0xff]
    %v146 = vld [vmem:[#allocation2 + $0x40] sm:$0xff]
    %v147 = vld [vmem:[#allocation2 + $0x48] sm:$0xff]
    %v148 = vld [vmem:[#allocation2 + $0x50] sm:$0xff]
    %v149 = vld [vmem:[#allocation2 + $0x58] sm:$0xff]
    %v150 = vld [vmem:[#allocation2 + $0x60] sm:$0xff]
    %v151 = vld [vmem:[#allocation2 + $0x68] sm:$0xff]
    %v152 = vld [vmem:[#allocation2 + $0x70] sm:$0xff]
    %v153 = vld [vmem:[#allocation2 + $0x78] sm:$0xff]
    %v154 = vld [vmem:[#allocation2 + $0x80] sm:$0xff]
    %v155 = vld [vmem:[#allocation2 + $0x88] sm:$0xff]
    %v156 = vld [vmem:[#allocation2 + $0x90] sm:$0xff]
    %v157 = vld [vmem:[#allocation2 + $0x98] sm:$0xff]
    %v158 = vld [vmem:[#allocation2 + $0xa0] sm:$0xff]
    %v159 = vld [vmem:[#allocation2 + $0xa8] sm:$0xff]
    %v160 = vld [vmem:[#allocation2 + $0xb0] sm:$0xff]
    %v161 = vld [vmem:[#allocation2 + $0xb8] sm:$0xff]
    %v162 = vld [vmem:[#allocation2 + $0xc0] sm:$0xff]
    %v163 = vld [vmem:[#allocation2 + $0xc8] sm:$0xff]
    %v164 = vld [vmem:[#allocation2 + $0xd0] sm:$0xff]
    %v165 = vld [vmem:[#allocation2 + $0xd8] sm:$0xff]
    %v166 = vld [vmem:[#allocation2 + $0xe0] sm:$0xff]
    %v167 = vld [vmem:[#allocation2 + $0xe8] sm:$0xff]
    %v168 = vld [vmem:[#allocation2 + $0xf0] sm:$0xff]
    %v169 = vld [vmem:[#allocation2 + $0xf8] sm:$0xff]
    %v170 = vld [vmem:[#allocation5] sm:$0xf]
    %v171 = vld [vmem:[#allocation5 + $0x4] sm:$0xf]
    %v172 = vld [vmem:[#allocation5 + $0x8] sm:$0xf]
    %v173 = vld [vmem:[#allocation5 + $0xc] sm:$0xf]
    %v174 = vld [vmem:[#allocation5 + $0x10] sm:$0xf]
    %v175 = vld [vmem:[#allocation5 + $0x14] sm:$0xf]
    %v176 = vld [vmem:[#allocation5 + $0x18] sm:$0xf]
    %v177 = vld [vmem:[#allocation5 + $0x1c] sm:$0xf]
    %v178 = vld [vmem:[#allocation5 + $0x20] sm:$0xf]
    %v179 = vld [vmem:[#allocation5 + $0x24] sm:$0xf]
    %v180 = vld [vmem:[#allocation5 + $0x28] sm:$0xf]
    %v181 = vld [vmem:[#allocation5 + $0x2c] sm:$0xf]
    %v182 = vld [vmem:[#allocation5 + $0x30] sm:$0xf]
    %v183 = vld [vmem:[#allocation5 + $0x34] sm:$0xf]
    %v184 = vld [vmem:[#allocation5 + $0x38] sm:$0xf]
    %v185 = vld [vmem:[#allocation5 + $0x3c] sm:$0xf]
    %v186 = vld [vmem:[#allocation5 + $0x40] sm:$0xf]
    %v187 = vld [vmem:[#allocation5 + $0x44] sm:$0xf]
    %v188 = vld [vmem:[#allocation5 + $0x48] sm:$0xf]
    %v189 = vld [vmem:[#allocation5 + $0x4c] sm:$0xf]
    %v190 = vld [vmem:[#allocation5 + $0x50] sm:$0xf]
    %v191 = vld [vmem:[#allocation5 + $0x54] sm:$0xf]
    %v192 = vld [vmem:[#allocation5 + $0x58] sm:$0xf]
    %v193 = vld [vmem:[#allocation5 + $0x5c] sm:$0xf]
    %v194 = vld [vmem:[#allocation5 + $0x60] sm:$0xf]
    %v195 = vld [vmem:[#allocation5 + $0x64] sm:$0xf]
    %v196 = vld [vmem:[#allocation5 + $0x68] sm:$0xf]
    %v197 = vld [vmem:[#allocation5 + $0x6c] sm:$0xf]
    %v198 = vld [vmem:[#allocation5 + $0x70] sm:$0xf]
    %v199 = vld [vmem:[#allocation5 + $0x74] sm:$0xf]
    %v200 = vld [vmem:[#allocation5 + $0x78] sm:$0xf]
    %v201 = vld [vmem:[#allocation5 + $0x7c] sm:$0xf]
    %v202 = vld [vmem:[#allocation7] sm:$0xf]
    %v203 = vld [vmem:[#allocation7 + $0x4] sm:$0xf]
    %v204 = vld [vmem:[#allocation7 + $0x8] sm:$0xf]
    %v205 = vld [vmem:[#allocation7 + $0xc] sm:$0xf]
    %v206 = vld [vmem:[#allocation7 + $0x10] sm:$0xf]
    %v207 = vld [vmem:[#allocation7 + $0x14] sm:$0xf]
    %v208 = vld [vmem:[#allocation7 + $0x18] sm:$0xf]
    %v209 = vld [vmem:[#allocation7 + $0x1c] sm:$0xf]
    %v210 = vld [vmem:[#allocation7 + $0x20] sm:$0xf]
    %v211 = vld [vmem:[#allocation7 + $0x24] sm:$0xf]
    %v212 = vld [vmem:[#allocation7 + $0x28] sm:$0xf]
    %v213 = vld [vmem:[#allocation7 + $0x2c] sm:$0xf]
    %v214 = vld [vmem:[#allocation7 + $0x30] sm:$0xf]
    %v215 = vld [vmem:[#allocation7 + $0x34] sm:$0xf]
    %v216 = vld [vmem:[#allocation7 + $0x38] sm:$0xf]
    %v217 = vld [vmem:[#allocation7 + $0x3c] sm:$0xf]
    %v218 = vld [vmem:[%s3] sm:$0x1]
    %v251 = vunpack.c.l.b16 %v170
    %v252 = vunpack.c.l.b16 %v171
    %v253 = vunpack.c.l.b16 %v172
    %v254 = vunpack.c.l.b16 %v173
    %v255 = vunpack.c.l.b16 %v174
    %v256 = vunpack.c.l.b16 %v175
    %v257 = vunpack.c.l.b16 %v176
    %v258 = vunpack.c.l.b16 %v177
    %v259 = vunpack.c.l.b16 %v178
    %v260 = vunpack.c.l.b16 %v179
    %v261 = vunpack.c.l.b16 %v180
    %v262 = vunpack.c.l.b16 %v181
    %v263 = vunpack.c.l.b16 %v182
    %v264 = vunpack.c.l.b16 %v183
    %v265 = vunpack.c.l.b16 %v184
    %v266 = vunpack.c.l.b16 %v185
    %v267 = vunpack.c.l.b16 %v186
    %v268 = vunpack.c.l.b16 %v187
    %v269 = vunpack.c.l.b16 %v188
    %v270 = vunpack.c.l.b16 %v189
    %v271 = vunpack.c.l.b16 %v190
    %v272 = vunpack.c.l.b16 %v191
    %v273 = vunpack.c.l.b16 %v192
    %v274 = vunpack.c.l.b16 %v193
    %v275 = vunpack.c.l.b16 %v194
    %v276 = vunpack.c.l.b16 %v195
    %v277 = vunpack.c.l.b16 %v196
    %v278 = vunpack.c.l.b16 %v197
    %v279 = vunpack.c.l.b16 %v198
    %v280 = vunpack.c.l.b16 %v199
    %v281 = vunpack.c.l.b16 %v200
    %v282 = vunpack.c.l.b16 %v201
    %v283 = vpack.c.b16 %v252, %v251
    %v284 = vpack.c.b16 %v254, %v253
    %v285 = vpack.c.b16 %v256, %v255
    %v286 = vpack.c.b16 %v258, %v257
    %v287 = vpack.c.b16 %v260, %v259
    %v288 = vpack.c.b16 %v262, %v261
    %v289 = vpack.c.b16 %v264, %v263
    %v290 = vpack.c.b16 %v266, %v265
    %v291 = vpack.c.b16 %v268, %v267
    %v292 = vpack.c.b16 %v270, %v269
    %v293 = vpack.c.b16 %v272, %v271
    %v294 = vpack.c.b16 %v274, %v273
    %v295 = vpack.c.b16 %v276, %v275
    %v296 = vpack.c.b16 %v278, %v277
    %v297 = vpack.c.b16 %v280, %v279
    %v298 = vpack.c.b16 %v282, %v281
    %v331 = vunpack.c.l.b16 %v202
    %v332 = vunpack.c.l.b16 %v203
    %v333 = vunpack.c.l.b16 %v204
    %v334 = vunpack.c.l.b16 %v205
    %v335 = vunpack.c.l.b16 %v206
    %v336 = vunpack.c.l.b16 %v207
    %v337 = vunpack.c.l.b16 %v208
    %v338 = vunpack.c.l.b16 %v209
    %v339 = vunpack.c.l.b16 %v210
    %v340 = vunpack.c.l.b16 %v211
    %v341 = vunpack.c.l.b16 %v212
    %v342 = vunpack.c.l.b16 %v213
    %v343 = vunpack.c.l.b16 %v214
    %v344 = vunpack.c.l.b16 %v215
    %v345 = vunpack.c.l.b16 %v216
    %v346 = vunpack.c.l.b16 %v217
    %v347 = vpack.c.b16 %v332, %v331
    %v348 = vpack.c.b16 %v334, %v333
    %v349 = vpack.c.b16 %v336, %v335
    %v350 = vpack.c.b16 %v338, %v337
    %v351 = vpack.c.b16 %v340, %v339
    %v352 = vpack.c.b16 %v342, %v341
    %v353 = vpack.c.b16 %v344, %v343
    %v354 = vpack.c.b16 %v346, %v345
    %363 = vmatprep.subr.bf16.mxu0 0
    %364 = vmatpush1.bf16.msra.mxu0 %v347
    %365 = vmatprep.subr.bf16.mxu0 0
    %366 = vmatpush1.bf16.msra.mxu0 %v348
    %367 = vmatprep.subr.bf16.mxu0 0
    %368 = vmatpush1.bf16.msra.mxu0 %v349
    %369 = vmatprep.subr.bf16.mxu0 0
    %370 = vmatpush1.bf16.msra.mxu0 %v350
    %371 = vmatprep.subr.bf16.mxu0 0
    %372 = vmatpush1.bf16.msra.mxu0 %v351
    %373 = vmatprep.subr.bf16.mxu0 0
    %374 = vmatpush1.bf16.msra.mxu0 %v352
    %375 = vmatprep.subr.bf16.mxu0 0
    %376 = vmatpush1.bf16.msra.mxu0 %v353
    %377 = vmatprep.subr.bf16.mxu0 0
    %378 = vmatpush1.bf16.msra.mxu0 %v354
    %379 = vmatprep.subr.bf16.mxu0 0
    %380 = vmatpush1.bf16.msra.mxu0 0
    %381 = vmatprep.subr.bf16.mxu0 0
    %382 = vmatpush1.bf16.msra.mxu0 0
    %383 = vmatprep.subr.bf16.mxu0 0
    %384 = vmatpush1.bf16.msra.mxu0 0
    %385 = vmatprep.subr.bf16.mxu0 0
    %386 = vmatpush1.bf16.msra.mxu0 0
    %387 = vmatprep.subr.bf16.mxu0 0
    %388 = vmatpush1.bf16.msra.mxu0 0
    %389 = vmatprep.subr.bf16.mxu0 0
    %390 = vmatpush1.bf16.msra.mxu0 0
    %391 = vmatprep.subr.bf16.mxu0 0
    %392 = vmatpush1.bf16.msra.mxu0 0
    %393 = vmatprep.subr.bf16.mxu0 0
    %394 = vmatpush1.bf16.msra.mxu0 0
    %395 = vmatprep.mubr.bf16.mxu0 0
    %396 = vmatmul.mubr.bf16.gmra.mrb[0].mxu0 %v283
    %v397 = vpop.f32.mrb[0].mxu0
    %v398 = vadd.f32 0.0, %v397
    %v399 = vpop.f32.mrb[0].mxu0
    %v400 = vpop.f32.mrb[0].mxu0
    %v401 = vadd.f32 0.0, %v400
    %v402 = vpop.f32.mrb[0].mxu0
    %403 = vmatprep.mubr.bf16.mxu0 0
    %404 = vmatmul.mubr.bf16.gmra.mrb[0].mxu0 %v284
    %v405 = vpop.f32.mrb[0].mxu0
    %v406 = vadd.f32 0.0, %v405
    %v407 = vpop.f32.mrb[0].mxu0
    %v408 = vpop.f32.mrb[0].mxu0
    %v409 = vadd.f32 0.0, %v408
    %v410 = vpop.f32.mrb[0].mxu0
    %411 = vmatprep.mubr.bf16.mxu0 0
    %412 = vmatmul.mubr.bf16.gmra.mrb[0].mxu0 %v285
    %v413 = vpop.f32.mrb[0].mxu0
    %v414 = vadd.f32 0.0, %v413
    %v415 = vpop.f32.mrb[0].mxu0
    %v416 = vpop.f32.mrb[0].mxu0
    %v417 = vadd.f32 0.0, %v416
    %v418 = vpop.f32.mrb[0].mxu0
    %419 = vmatprep.mubr.bf16.mxu0 0
    %420 = vmatmul.mubr.bf16.gmra.mrb[0].mxu0 %v286
    %v421 = vpop.f32.mrb[0].mxu0
    %v422 = vadd.f32 0.0, %v421
    %v423 = vpop.f32.mrb[0].mxu0
    %v424 = vpop.f32.mrb[0].mxu0
    %v425 = vadd.f32 0.0, %v424
    %v426 = vpop.f32.mrb[0].mxu0
    %427 = vmatprep.mubr.bf16.mxu0 0
    %428 = vmatmul.mubr.bf16.gmra.mrb[0].mxu0 %v287
    %v429 = vpop.f32.mrb[0].mxu0
    %v430 = vadd.f32 0.0, %v429
    %v431 = vpop.f32.mrb[0].mxu0
    %v432 = vpop.f32.mrb[0].mxu0
    %v433 = vadd.f32 0.0, %v432
    %v434 = vpop.f32.mrb[0].mxu0
    %435 = vmatprep.mubr.bf16.mxu0 0
    %436 = vmatmul.mubr.bf16.gmra.mrb[0].mxu0 %v288
    %v437 = vpop.f32.mrb[0].mxu0
    %v438 = vadd.f32 0.0, %v437
    %v439 = vpop.f32.mrb[0].mxu0
    %v440 = vpop.f32.mrb[0].mxu0
    %v441 = vadd.f32 0.0, %v440
    %v442 = vpop.f32.mrb[0].mxu0
    %443 = vmatprep.mubr.bf16.mxu0 0
    %444 = vmatmul.mubr.bf16.gmra.mrb[0].mxu0 %v289
    %v445 = vpop.f32.mrb[0].mxu0
    %v446 = vadd.f32 0.0, %v445
    %v447 = vpop.f32.mrb[0].mxu0
    %v448 = vpop.f32.mrb[0].mxu0
    %v449 = vadd.f32 0.0, %v448
    %v450 = vpop.f32.mrb[0].mxu0
    %451 = vmatprep.mubr.bf16.mxu0 0
    %452 = vmatmul.mubr.bf16.gmra.mrb[0].mxu0 %v290
    %v453 = vpop.f32.mrb[0].mxu0
    %v454 = vadd.f32 0.0, %v453
    %v455 = vpop.f32.mrb[0].mxu0
    %v456 = vpop.f32.mrb[0].mxu0
    %v457 = vadd.f32 0.0, %v456
    %v458 = vpop.f32.mrb[0].mxu0
    %459 = vmatprep.mubr.bf16.mxu0 0
    %460 = vmatmul.mubr.bf16.gmra.mrb[0].mxu0 %v291
    %v461 = vpop.f32.mrb[0].mxu0
    %v462 = vadd.f32 0.0, %v461
    %v463 = vpop.f32.mrb[0].mxu0
    %v464 = vpop.f32.mrb[0].mxu0
    %v465 = vadd.f32 0.0, %v464
    %v466 = vpop.f32.mrb[0].mxu0
    %467 = vmatprep.mubr.bf16.mxu0 0
    %468 = vmatmul.mubr.bf16.gmra.mrb[0].mxu0 %v292
    %v469 = vpop.f32.mrb[0].mxu0
    %v470 = vadd.f32 0.0, %v469
    %v471 = vpop.f32.mrb[0].mxu0
    %v472 = vpop.f32.mrb[0].mxu0
    %v473 = vadd.f32 0.0, %v472
    %v474 = vpop.f32.mrb[0].mxu0
    %475 = vmatprep.mubr.bf16.mxu0 0
    %476 = vmatmul.mubr.bf16.gmra.mrb[0].mxu0 %v293
    %v477 = vpop.f32.mrb[0].mxu0
    %v478 = vadd.f32 0.0, %v477
    %v479 = vpop.f32.mrb[0].mxu0
    %v480 = vpop.f32.mrb[0].mxu0
    %v481 = vadd.f32 0.0, %v480
    %v482 = vpop.f32.mrb[0].mxu0
    %483 = vmatprep.mubr.bf16.mxu0 0
    %484 = vmatmul.mubr.bf16.gmra.mrb[0].mxu0 %v294
    %v485 = vpop.f32.mrb[0].mxu0
    %v486 = vadd.f32 0.0, %v485
    %v487 = vpop.f32.mrb[0].mxu0
    %v488 = vpop.f32.mrb[0].mxu0
    %v489 = vadd.f32 0.0, %v488
    %v490 = vpop.f32.mrb[0].mxu0
    %491 = vmatprep.mubr.bf16.mxu0 0
    %492 = vmatmul.mubr.bf16.gmra.mrb[0].mxu0 %v295
    %v493 = vpop.f32.mrb[0].mxu0
    %v494 = vadd.f32 0.0, %v493
    %v495 = vpop.f32.mrb[0].mxu0
    %v496 = vpop.f32.mrb[0].mxu0
    %v497 = vadd.f32 0.0, %v496
    %v498 = vpop.f32.mrb[0].mxu0
    %499 = vmatprep.mubr.bf16.mxu0 0
    %500 = vmatmul.mubr.bf16.gmra.mrb[0].mxu0 %v296
    %v501 = vpop.f32.mrb[0].mxu0
    %v502 = vadd.f32 0.0, %v501
    %v503 = vpop.f32.mrb[0].mxu0
    %v504 = vpop.f32.mrb[0].mxu0
    %v505 = vadd.f32 0.0, %v504
    %v506 = vpop.f32.mrb[0].mxu0
    %507 = vmatprep.mubr.bf16.mxu0 0
    %508 = vmatmul.mubr.bf16.gmra.mrb[0].mxu0 %v297
    %v509 = vpop.f32.mrb[0].mxu0
    %v510 = vadd.f32 0.0, %v509
    %v511 = vpop.f32.mrb[0].mxu0
    %v512 = vpop.f32.mrb[0].mxu0
    %v513 = vadd.f32 0.0, %v512
    %v514 = vpop.f32.mrb[0].mxu0
    %515 = vmatprep.mubr.bf16.mxu0 0
    %516 = vmatmul.mubr.bf16.gmra.mrb[0].mxu0 %v298
    %v517 = vpop.f32.mrb[0].mxu0
    %v518 = vadd.f32 0.0, %v517
    %v519 = vpop.f32.mrb[0].mxu0
    %v520 = vpop.f32.mrb[0].mxu0
    %v521 = vadd.f32 0.0, %v520
    %v522 = vpop.f32.mrb[0].mxu0
    %523 = vdwg.mxu0
    %v524 = vpack.c.bf16 %v401, %v398
    %v525 = vpack.c.bf16 %v409, %v406
    %v526 = vpack.c.bf16 %v417, %v414
    %v527 = vpack.c.bf16 %v425, %v422
    %v528 = vpack.c.bf16 %v433, %v430
    %v529 = vpack.c.bf16 %v441, %v438
    %v530 = vpack.c.bf16 %v449, %v446
    %v531 = vpack.c.bf16 %v457, %v454
    %v532 = vpack.c.bf16 %v465, %v462
    %v533 = vpack.c.bf16 %v473, %v470
    %v534 = vpack.c.bf16 %v481, %v478
    %v535 = vpack.c.bf16 %v489, %v486
    %v536 = vpack.c.bf16 %v497, %v494
    %v537 = vpack.c.bf16 %v505, %v502
    %v538 = vpack.c.bf16 %v513, %v510
    %v539 = vpack.c.bf16 %v521, %v518
    %v541 = vlaneseq
    %v542 = vshrl.u32 %v541, 7
    %v543 = vsub.s32 0, %v542
    %v544 = vrot.slane %v218, %v543
    %v578 = vunpack.c.l.b16 %v138
    %v579 = vunpack.c.h.b16 %v138
    %v580 = vunpack.c.l.b16 %v139
    %v581 = vunpack.c.h.b16 %v139
    %v582 = vunpack.c.l.b16 %v140
    %v583 = vunpack.c.h.b16 %v140
    %v584 = vunpack.c.l.b16 %v141
    %v585 = vunpack.c.h.b16 %v141
    %v586 = vunpack.c.l.b16 %v142
    %v587 = vunpack.c.h.b16 %v142
    %v588 = vunpack.c.l.b16 %v143
    %v589 = vunpack.c.h.b16 %v143
    %v590 = vunpack.c.l.b16 %v144
    %v591 = vunpack.c.h.b16 %v144
    %v592 = vunpack.c.l.b16 %v145
    %v593 = vunpack.c.h.b16 %v145
    %v594 = vunpack.c.l.b16 %v146
    %v595 = vunpack.c.h.b16 %v146
    %v596 = vunpack.c.l.b16 %v147
    %v597 = vunpack.c.h.b16 %v147
    %v598 = vunpack.c.l.b16 %v148
    %v599 = vunpack.c.h.b16 %v148
    %v600 = vunpack.c.l.b16 %v149
    %v601 = vunpack.c.h.b16 %v149
    %v602 = vunpack.c.l.b16 %v150
    %v603 = vunpack.c.h.b16 %v150
    %v604 = vunpack.c.l.b16 %v151
    %v605 = vunpack.c.h.b16 %v151
    %v606 = vunpack.c.l.b16 %v152
    %v607 = vunpack.c.h.b16 %v152
    %v608 = vunpack.c.l.b16 %v153
    %v609 = vunpack.c.h.b16 %v153
    %v610 = vunpack.c.l.b16 %v154
    %v611 = vunpack.c.h.b16 %v154
    %v612 = vunpack.c.l.b16 %v155
    %v613 = vunpack.c.h.b16 %v155
    %v614 = vunpack.c.l.b16 %v156
    %v615 = vunpack.c.h.b16 %v156
    %v616 = vunpack.c.l.b16 %v157
    %v617 = vunpack.c.h.b16 %v157
    %v618 = vunpack.c.l.b16 %v158
    %v619 = vunpack.c.h.b16 %v158
    %v620 = vunpack.c.l.b16 %v159
    %v621 = vunpack.c.h.b16 %v159
    %v622 = vunpack.c.l.b16 %v160
    %v623 = vunpack.c.h.b16 %v160
    %v624 = vunpack.c.l.b16 %v161
    %v625 = vunpack.c.h.b16 %v161
    %v626 = vunpack.c.l.b16 %v162
    %v627 = vunpack.c.h.b16 %v162
    %v628 = vunpack.c.l.b16 %v163
    %v629 = vunpack.c.h.b16 %v163
    %v630 = vunpack.c.l.b16 %v164
    %v631 = vunpack.c.h.b16 %v164
    %v632 = vunpack.c.l.b16 %v165
    %v633 = vunpack.c.h.b16 %v165
    %v634 = vunpack.c.l.b16 %v166
    %v635 = vunpack.c.h.b16 %v166
    %v636 = vunpack.c.l.b16 %v167
    %v637 = vunpack.c.h.b16 %v167
    %v638 = vunpack.c.l.b16 %v168
    %v639 = vunpack.c.h.b16 %v168
    %v640 = vunpack.c.l.b16 %v169
    %v641 = vunpack.c.h.b16 %v169
    %v642 = vpack.c.b16 %v580, %v578
    %v643 = vpack.c.b16 %v581, %v579
    %v644 = vpack.c.b16 %v584, %v582
    %v645 = vpack.c.b16 %v585, %v583
    %v646 = vpack.c.b16 %v588, %v586
    %v647 = vpack.c.b16 %v589, %v587
    %v648 = vpack.c.b16 %v592, %v590
    %v649 = vpack.c.b16 %v593, %v591
    %v650 = vpack.c.b16 %v596, %v594
    %v651 = vpack.c.b16 %v597, %v595
    %v652 = vpack.c.b16 %v600, %v598
    %v653 = vpack.c.b16 %v601, %v599
    %v654 = vpack.c.b16 %v604, %v602
    %v655 = vpack.c.b16 %v605, %v603
    %v656 = vpack.c.b16 %v608, %v606
    %v657 = vpack.c.b16 %v609, %v607
    %v658 = vpack.c.b16 %v612, %v610
    %v659 = vpack.c.b16 %v613, %v611
    %v660 = vpack.c.b16 %v616, %v614
    %v661 = vpack.c.b16 %v617, %v615
    %v662 = vpack.c.b16 %v620, %v618
    %v663 = vpack.c.b16 %v621, %v619
    %v664 = vpack.c.b16 %v624, %v622
    %v665 = vpack.c.b16 %v625, %v623
    %v666 = vpack.c.b16 %v628, %v626
    %v667 = vpack.c.b16 %v629, %v627
    %v668 = vpack.c.b16 %v632, %v630
    %v669 = vpack.c.b16 %v633, %v631
    %v670 = vpack.c.b16 %v636, %v634
    %v671 = vpack.c.b16 %v637, %v635
    %v672 = vpack.c.b16 %v640, %v638
    %v673 = vpack.c.b16 %v641, %v639
    %706 = vmatprep.subr.bf16.mxu0 0
    %707 = vmatpush1.bf16.msra.mxu0 %v524
    %708 = vmatprep.subr.bf16.mxu0 0
    %709 = vmatpush1.bf16.msra.mxu0 %v525
    %710 = vmatprep.subr.bf16.mxu0 0
    %711 = vmatpush1.bf16.msra.mxu0 %v526
    %712 = vmatprep.subr.bf16.mxu0 0
    %713 = vmatpush1.bf16.msra.mxu0 %v527
    %714 = vmatprep.subr.bf16.mxu0 0
    %715 = vmatpush1.bf16.msra.mxu0 %v528
    %716 = vmatprep.subr.bf16.mxu0 0
    %717 = vmatpush1.bf16.msra.mxu0 %v529
    %718 = vmatprep.subr.bf16.mxu0 0
    %719 = vmatpush1.bf16.msra.mxu0 %v530
    %720 = vmatprep.subr.bf16.mxu0 0
    %721 = vmatpush1.bf16.msra.mxu0 %v531
    %722 = vmatprep.subr.bf16.mxu0 0
    %723 = vmatpush1.bf16.msra.mxu0 %v532
    %724 = vmatprep.subr.bf16.mxu0 0
    %725 = vmatpush1.bf16.msra.mxu0 %v533
    %726 = vmatprep.subr.bf16.mxu0 0
    %727 = vmatpush1.bf16.msra.mxu0 %v534
    %728 = vmatprep.subr.bf16.mxu0 0
    %729 = vmatpush1.bf16.msra.mxu0 %v535
    %730 = vmatprep.subr.bf16.mxu0 0
    %731 = vmatpush1.bf16.msra.mxu0 %v536
    %732 = vmatprep.subr.bf16.mxu0 0
    %733 = vmatpush1.bf16.msra.mxu0 %v537
    %734 = vmatprep.subr.bf16.mxu0 0
    %735 = vmatpush1.bf16.msra.mxu0 %v538
    %736 = vmatprep.subr.bf16.mxu0 0
    %737 = vmatpush1.bf16.msra.mxu0 %v539
    %738 = vmatprep.mubr.bf16.mxu0 %v643
    %739 = vmatmul.mubr.bf16.gmra.mrb[0].mxu0 %v642
    %v740 = vpop.f32.mrb[0].mxu0
    %v741 = vadd.f32 %v544, %v740
    %v742 = vpop.f32.mrb[0].mxu0
    %v743 = vpop.f32.mrb[0].mxu0
    %v744 = vadd.f32 %v544, %v743
    %v745 = vpop.f32.mrb[0].mxu0
    %746 = vmatprep.mubr.bf16.mxu0 %v645
    %747 = vmatmul.mubr.bf16.gmra.mrb[0].mxu0 %v644
    %v748 = vpop.f32.mrb[0].mxu0
    %v749 = vadd.f32 %v544, %v748
    %v750 = vpop.f32.mrb[0].mxu0
    %v751 = vpop.f32.mrb[0].mxu0
    %v752 = vadd.f32 %v544, %v751
    %v753 = vpop.f32.mrb[0].mxu0
    %754 = vmatprep.mubr.bf16.mxu0 %v647
    %755 = vmatmul.mubr.bf16.gmra.mrb[0].mxu0 %v646
    %v756 = vpop.f32.mrb[0].mxu0
    %v757 = vadd.f32 %v544, %v756
    %v758 = vpop.f32.mrb[0].mxu0
    %v759 = vpop.f32.mrb[0].mxu0
    %v760 = vadd.f32 %v544, %v759
    %v761 = vpop.f32.mrb[0].mxu0
    %762 = vmatprep.mubr.bf16.mxu0 %v649
    %763 = vmatmul.mubr.bf16.gmra.mrb[0].mxu0 %v648
    %v764 = vpop.f32.mrb[0].mxu0
    %v765 = vadd.f32 %v544, %v764
    %v766 = vpop.f32.mrb[0].mxu0
    %v767 = vpop.f32.mrb[0].mxu0
    %v768 = vadd.f32 %v544, %v767
    %v769 = vpop.f32.mrb[0].mxu0
    %770 = vmatprep.mubr.bf16.mxu0 %v651
    %771 = vmatmul.mubr.bf16.gmra.mrb[0].mxu0 %v650
    %v772 = vpop.f32.mrb[0].mxu0
    %v773 = vadd.f32 %v544, %v772
    %v774 = vpop.f32.mrb[0].mxu0
    %v775 = vpop.f32.mrb[0].mxu0
    %v776 = vadd.f32 %v544, %v775
    %v777 = vpop.f32.mrb[0].mxu0
    %778 = vmatprep.mubr.bf16.mxu0 %v653
    %779 = vmatmul.mubr.bf16.gmra.mrb[0].mxu0 %v652
    %v780 = vpop.f32.mrb[0].mxu0
    %v781 = vadd.f32 %v544, %v780
    %v782 = vpop.f32.mrb[0].mxu0
    %v783 = vpop.f32.mrb[0].mxu0
    %v784 = vadd.f32 %v544, %v783
    %v785 = vpop.f32.mrb[0].mxu0
    %786 = vmatprep.mubr.bf16.mxu0 %v655
    %787 = vmatmul.mubr.bf16.gmra.mrb[0].mxu0 %v654
    %v788 = vpop.f32.mrb[0].mxu0
    %v789 = vadd.f32 %v544, %v788
    %v790 = vpop.f32.mrb[0].mxu0
    %v791 = vpop.f32.mrb[0].mxu0
    %v792 = vadd.f32 %v544, %v791
    %v793 = vpop.f32.mrb[0].mxu0
    %794 = vmatprep.mubr.bf16.mxu0 %v657
    %795 = vmatmul.mubr.bf16.gmra.mrb[0].mxu0 %v656
    %v796 = vpop.f32.mrb[0].mxu0
    %v797 = vadd.f32 %v544, %v796
    %v798 = vpop.f32.mrb[0].mxu0
    %v799 = vpop.f32.mrb[0].mxu0
    %v800 = vadd.f32 %v544, %v799
    %v801 = vpop.f32.mrb[0].mxu0
    %802 = vmatprep.mubr.bf16.mxu0 %v659
    %803 = vmatmul.mubr.bf16.gmra.mrb[0].mxu0 %v658
    %v804 = vpop.f32.mrb[0].mxu0
    %v805 = vadd.f32 %v544, %v804
    %v806 = vpop.f32.mrb[0].mxu0
    %v807 = vpop.f32.mrb[0].mxu0
    %v808 = vadd.f32 %v544, %v807
    %v809 = vpop.f32.mrb[0].mxu0
    %810 = vmatprep.mubr.bf16.mxu0 %v661
    %811 = vmatmul.mubr.bf16.gmra.mrb[0].mxu0 %v660
    %v812 = vpop.f32.mrb[0].mxu0
    %v813 = vadd.f32 %v544, %v812
    %v814 = vpop.f32.mrb[0].mxu0
    %v815 = vpop.f32.mrb[0].mxu0
    %v816 = vadd.f32 %v544, %v815
    %v817 = vpop.f32.mrb[0].mxu0
    %818 = vmatprep.mubr.bf16.mxu0 %v663
    %819 = vmatmul.mubr.bf16.gmra.mrb[0].mxu0 %v662
    %v820 = vpop.f32.mrb[0].mxu0
    %v821 = vadd.f32 %v544, %v820
    %v822 = vpop.f32.mrb[0].mxu0
    %v823 = vpop.f32.mrb[0].mxu0
    %v824 = vadd.f32 %v544, %v823
    %v825 = vpop.f32.mrb[0].mxu0
    %826 = vmatprep.mubr.bf16.mxu0 %v665
    %827 = vmatmul.mubr.bf16.gmra.mrb[0].mxu0 %v664
    %v828 = vpop.f32.mrb[0].mxu0
    %v829 = vadd.f32 %v544, %v828
    %v830 = vpop.f32.mrb[0].mxu0
    %v831 = vpop.f32.mrb[0].mxu0
    %v832 = vadd.f32 %v544, %v831
    %v833 = vpop.f32.mrb[0].mxu0
    %834 = vmatprep.mubr.bf16.mxu0 %v667
    %835 = vmatmul.mubr.bf16.gmra.mrb[0].mxu0 %v666
    %v836 = vpop.f32.mrb[0].mxu0
    %v837 = vadd.f32 %v544, %v836
    %v838 = vpop.f32.mrb[0].mxu0
    %v839 = vpop.f32.mrb[0].mxu0
    %v840 = vadd.f32 %v544, %v839
    %v841 = vpop.f32.mrb[0].mxu0
    %842 = vmatprep.mubr.bf16.mxu0 %v669
    %843 = vmatmul.mubr.bf16.gmra.mrb[0].mxu0 %v668
    %v844 = vpop.f32.mrb[0].mxu0
    %v845 = vadd.f32 %v544, %v844
    %v846 = vpop.f32.mrb[0].mxu0
    %v847 = vpop.f32.mrb[0].mxu0
    %v848 = vadd.f32 %v544, %v847
    %v849 = vpop.f32.mrb[0].mxu0
    %850 = vmatprep.mubr.bf16.mxu0 %v671
    %851 = vmatmul.mubr.bf16.gmra.mrb[0].mxu0 %v670
    %v852 = vpop.f32.mrb[0].mxu0
    %v853 = vadd.f32 %v544, %v852
    %v854 = vpop.f32.mrb[0].mxu0
    %v855 = vpop.f32.mrb[0].mxu0
    %v856 = vadd.f32 %v544, %v855
    %v857 = vpop.f32.mrb[0].mxu0
    %858 = vmatprep.mubr.bf16.mxu0 %v673
    %859 = vmatmul.mubr.bf16.gmra.mrb[0].mxu0 %v672
    %v860 = vpop.f32.mrb[0].mxu0
    %v861 = vadd.f32 %v544, %v860
    %v862 = vpop.f32.mrb[0].mxu0
    %v863 = vpop.f32.mrb[0].mxu0
    %v864 = vadd.f32 %v544, %v863
    %v865 = vpop.f32.mrb[0].mxu0
    %866 = vdwg.mxu0
    %v867 = vmax.f32 %v741, 0.0
    %v868 = vmax.f32 %v744, 0.0
    %v869 = vmax.f32 %v749, 0.0
    %v870 = vmax.f32 %v752, 0.0
    %v871 = vmax.f32 %v757, 0.0
    %v872 = vmax.f32 %v760, 0.0
    %v873 = vmax.f32 %v765, 0.0
    %v874 = vmax.f32 %v768, 0.0
    %v875 = vmax.f32 %v773, 0.0
    %v876 = vmax.f32 %v776, 0.0
    %v877 = vmax.f32 %v781, 0.0
    %v878 = vmax.f32 %v784, 0.0
    %v879 = vmax.f32 %v789, 0.0
    %v880 = vmax.f32 %v792, 0.0
    %v881 = vmax.f32 %v797, 0.0
    %v882 = vmax.f32 %v800, 0.0
    %v883 = vmax.f32 %v805, 0.0
    %v884 = vmax.f32 %v808, 0.0
    %v885 = vmax.f32 %v813, 0.0
    %v886 = vmax.f32 %v816, 0.0
    %v887 = vmax.f32 %v821, 0.0
    %v888 = vmax.f32 %v824, 0.0
    %v889 = vmax.f32 %v829, 0.0
    %v890 = vmax.f32 %v832, 0.0
    %v891 = vmax.f32 %v837, 0.0
    %v892 = vmax.f32 %v840, 0.0
    %v893 = vmax.f32 %v845, 0.0
    %v894 = vmax.f32 %v848, 0.0
    %v895 = vmax.f32 %v853, 0.0
    %v896 = vmax.f32 %v856, 0.0
    %v897 = vmax.f32 %v861, 0.0
    %v898 = vmax.f32 %v864, 0.0
    %v899 = vpack.c.bf16 %v868, %v867
    %v900 = vpack.c.bf16 %v870, %v869
    %v901 = vpack.c.bf16 %v872, %v871
    %v902 = vpack.c.bf16 %v874, %v873
    %v903 = vpack.c.bf16 %v876, %v875
    %v904 = vpack.c.bf16 %v878, %v877
    %v905 = vpack.c.bf16 %v880, %v879
    %v906 = vpack.c.bf16 %v882, %v881
    %v907 = vpack.c.bf16 %v884, %v883
    %v908 = vpack.c.bf16 %v886, %v885
    %v909 = vpack.c.bf16 %v888, %v887
    %v910 = vpack.c.bf16 %v890, %v889
    %v911 = vpack.c.bf16 %v892, %v891
    %v912 = vpack.c.bf16 %v894, %v893
    %v913 = vpack.c.bf16 %v896, %v895
    %v914 = vpack.c.bf16 %v898, %v897
    %v915 = vld [vmem:[#allocation8] sm:$0xf]
    %v916 = vld [vmem:[#allocation8 + $0x4] sm:$0xf]
    %v917 = vld [vmem:[#allocation8 + $0x8] sm:$0xf]
    %v918 = vld [vmem:[#allocation8 + $0xc] sm:$0xf]
    %v919 = vld [vmem:[#allocation8 + $0x10] sm:$0xf]
    %v920 = vld [vmem:[#allocation8 + $0x14] sm:$0xf]
    %v921 = vld [vmem:[#allocation8 + $0x18] sm:$0xf]
    %v922 = vld [vmem:[#allocation8 + $0x1c] sm:$0xf]
    %v923 = vld [vmem:[#allocation8 + $0x20] sm:$0xf]
    %v924 = vld [vmem:[#allocation8 + $0x24] sm:$0xf]
    %v925 = vld [vmem:[#allocation8 + $0x28] sm:$0xf]
    %v926 = vld [vmem:[#allocation8 + $0x2c] sm:$0xf]
    %v927 = vld [vmem:[#allocation8 + $0x30] sm:$0xf]
    %v928 = vld [vmem:[#allocation8 + $0x34] sm:$0xf]
    %v929 = vld [vmem:[#allocation8 + $0x38] sm:$0xf]
    %v930 = vld [vmem:[#allocation8 + $0x3c] sm:$0xf]
    %v931 = vld [vmem:[%s5] sm:$0x1]
    %v948 = vunpack.c.l.b16 %v915
    %v949 = vunpack.c.l.b16 %v916
    %v950 = vunpack.c.l.b16 %v917
    %v951 = vunpack.c.l.b16 %v918
    %v952 = vunpack.c.l.b16 %v919
    %v953 = vunpack.c.l.b16 %v920
    %v954 = vunpack.c.l.b16 %v921
    %v955 = vunpack.c.l.b16 %v922
    %v956 = vunpack.c.l.b16 %v923
    %v957 = vunpack.c.l.b16 %v924
    %v958 = vunpack.c.l.b16 %v925
    %v959 = vunpack.c.l.b16 %v926
    %v960 = vunpack.c.l.b16 %v927
    %v961 = vunpack.c.l.b16 %v928
    %v962 = vunpack.c.l.b16 %v929
    %v963 = vunpack.c.l.b16 %v930
    %v964 = vpack.c.b16 %v949, %v948
    %v965 = vpack.c.b16 %v951, %v950
    %v966 = vpack.c.b16 %v953, %v952
    %v967 = vpack.c.b16 %v955, %v954
    %v968 = vpack.c.b16 %v957, %v956
    %v969 = vpack.c.b16 %v959, %v958
    %v970 = vpack.c.b16 %v961, %v960
    %v971 = vpack.c.b16 %v963, %v962
    %980 = vmatprep.subr.bf16.mxu0 0
    %981 = vmatpush1.bf16.msra.mxu0 %v964
    %982 = vmatprep.subr.bf16.mxu0 0
    %983 = vmatpush1.bf16.msra.mxu0 %v965
    %984 = vmatprep.subr.bf16.mxu0 0
    %985 = vmatpush1.bf16.msra.mxu0 %v966
    %986 = vmatprep.subr.bf16.mxu0 0
    %987 = vmatpush1.bf16.msra.mxu0 %v967
    %988 = vmatprep.subr.bf16.mxu0 0
    %989 = vmatpush1.bf16.msra.mxu0 %v968
    %990 = vmatprep.subr.bf16.mxu0 0
    %991 = vmatpush1.bf16.msra.mxu0 %v969
    %992 = vmatprep.subr.bf16.mxu0 0
    %993 = vmatpush1.bf16.msra.mxu0 %v970
    %994 = vmatprep.subr.bf16.mxu0 0
    %995 = vmatpush1.bf16.msra.mxu0 %v971
    %996 = vmatprep.subr.bf16.mxu0 0
    %997 = vmatpush1.bf16.msra.mxu0 0
    %998 = vmatprep.subr.bf16.mxu0 0
    %999 = vmatpush1.bf16.msra.mxu0 0
    %1000 = vmatprep.subr.bf16.mxu0 0
    %1001 = vmatpush1.bf16.msra.mxu0 0
    %1002 = vmatprep.subr.bf16.mxu0 0
    %1003 = vmatpush1.bf16.msra.mxu0 0
    %1004 = vmatprep.subr.bf16.mxu0 0
    %1005 = vmatpush1.bf16.msra.mxu0 0
    %1006 = vmatprep.subr.bf16.mxu0 0
    %1007 = vmatpush1.bf16.msra.mxu0 0
    %1008 = vmatprep.subr.bf16.mxu0 0
    %1009 = vmatpush1.bf16.msra.mxu0 0
    %1010 = vmatprep.subr.bf16.mxu0 0
    %1011 = vmatpush1.bf16.msra.mxu0 0
    %1012 = vmatprep.mubr.bf16.mxu0 0
    %1013 = vmatmul.mubr.bf16.gmra.mrb[0].mxu0 %v899
    %v1014 = vpop.f32.mrb[0].mxu0
    %v1015 = vadd.f32 0.0, %v1014
    %v1016 = vpop.f32.mrb[0].mxu0
    %v1017 = vpop.f32.mrb[0].mxu0
    %v1018 = vadd.f32 0.0, %v1017
    %v1019 = vpop.f32.mrb[0].mxu0
    %1020 = vmatprep.mubr.bf16.mxu0 0
    %1021 = vmatmul.mubr.bf16.gmra.mrb[0].mxu0 %v900
    %v1022 = vpop.f32.mrb[0].mxu0
    %v1023 = vadd.f32 0.0, %v1022
    %v1024 = vpop.f32.mrb[0].mxu0
    %v1025 = vpop.f32.mrb[0].mxu0
    %v1026 = vadd.f32 0.0, %v1025
    %v1027 = vpop.f32.mrb[0].mxu0
    %1028 = vmatprep.mubr.bf16.mxu0 0
    %1029 = vmatmul.mubr.bf16.gmra.mrb[0].mxu0 %v901
    %v1030 = vpop.f32.mrb[0].mxu0
    %v1031 = vadd.f32 0.0, %v1030
    %v1032 = vpop.f32.mrb[0].mxu0
    %v1033 = vpop.f32.mrb[0].mxu0
    %v1034 = vadd.f32 0.0, %v1033
    %v1035 = vpop.f32.mrb[0].mxu0
    %1036 = vmatprep.mubr.bf16.mxu0 0
    %1037 = vmatmul.mubr.bf16.gmra.mrb[0].mxu0 %v902
    %v1038 = vpop.f32.mrb[0].mxu0
    %v1039 = vadd.f32 0.0, %v1038
    %v1040 = vpop.f32.mrb[0].mxu0
    %v1041 = vpop.f32.mrb[0].mxu0
    %v1042 = vadd.f32 0.0, %v1041
    %v1043 = vpop.f32.mrb[0].mxu0
    %1044 = vmatprep.mubr.bf16.mxu0 0
    %1045 = vmatmul.mubr.bf16.gmra.mrb[0].mxu0 %v903
    %v1046 = vpop.f32.mrb[0].mxu0
    %v1047 = vadd.f32 0.0, %v1046
    %v1048 = vpop.f32.mrb[0].mxu0
    %v1049 = vpop.f32.mrb[0].mxu0
    %v1050 = vadd.f32 0.0, %v1049
    %v1051 = vpop.f32.mrb[0].mxu0
    %1052 = vmatprep.mubr.bf16.mxu0 0
    %1053 = vmatmul.mubr.bf16.gmra.mrb[0].mxu0 %v904
    %v1054 = vpop.f32.mrb[0].mxu0
    %v1055 = vadd.f32 0.0, %v1054
    %v1056 = vpop.f32.mrb[0].mxu0
    %v1057 = vpop.f32.mrb[0].mxu0
    %v1058 = vadd.f32 0.0, %v1057
    %v1059 = vpop.f32.mrb[0].mxu0
    %1060 = vmatprep.mubr.bf16.mxu0 0
    %1061 = vmatmul.mubr.bf16.gmra.mrb[0].mxu0 %v905
    %v1062 = vpop.f32.mrb[0].mxu0
    %v1063 = vadd.f32 0.0, %v1062
    %v1064 = vpop.f32.mrb[0].mxu0
    %v1065 = vpop.f32.mrb[0].mxu0
    %v1066 = vadd.f32 0.0, %v1065
    %v1067 = vpop.f32.mrb[0].mxu0
    %1068 = vmatprep.mubr.bf16.mxu0 0
    %1069 = vmatmul.mubr.bf16.gmra.mrb[0].mxu0 %v906
    %v1070 = vpop.f32.mrb[0].mxu0
    %v1071 = vadd.f32 0.0, %v1070
    %v1072 = vpop.f32.mrb[0].mxu0
    %v1073 = vpop.f32.mrb[0].mxu0
    %v1074 = vadd.f32 0.0, %v1073
    %v1075 = vpop.f32.mrb[0].mxu0
    %1076 = vmatprep.mubr.bf16.mxu0 0
    %1077 = vmatmul.mubr.bf16.gmra.mrb[0].mxu0 %v907
    %v1078 = vpop.f32.mrb[0].mxu0
    %v1079 = vadd.f32 0.0, %v1078
    %v1080 = vpop.f32.mrb[0].mxu0
    %v1081 = vpop.f32.mrb[0].mxu0
    %v1082 = vadd.f32 0.0, %v1081
    %v1083 = vpop.f32.mrb[0].mxu0
    %1084 = vmatprep.mubr.bf16.mxu0 0
    %1085 = vmatmul.mubr.bf16.gmra.mrb[0].mxu0 %v908
    %v1086 = vpop.f32.mrb[0].mxu0
    %v1087 = vadd.f32 0.0, %v1086
    %v1088 = vpop.f32.mrb[0].mxu0
    %v1089 = vpop.f32.mrb[0].mxu0
    %v1090 = vadd.f32 0.0, %v1089
    %v1091 = vpop.f32.mrb[0].mxu0
    %1092 = vmatprep.mubr.bf16.mxu0 0
    %1093 = vmatmul.mubr.bf16.gmra.mrb[0].mxu0 %v909
    %v1094 = vpop.f32.mrb[0].mxu0
    %v1095 = vadd.f32 0.0, %v1094
    %v1096 = vpop.f32.mrb[0].mxu0
    %v1097 = vpop.f32.mrb[0].mxu0
    %v1098 = vadd.f32 0.0, %v1097
    %v1099 = vpop.f32.mrb[0].mxu0
    %1100 = vmatprep.mubr.bf16.mxu0 0
    %1101 = vmatmul.mubr.bf16.gmra.mrb[0].mxu0 %v910
    %v1102 = vpop.f32.mrb[0].mxu0
    %v1103 = vadd.f32 0.0, %v1102
    %v1104 = vpop.f32.mrb[0].mxu0
    %v1105 = vpop.f32.mrb[0].mxu0
    %v1106 = vadd.f32 0.0, %v1105
    %v1107 = vpop.f32.mrb[0].mxu0
    %1108 = vmatprep.mubr.bf16.mxu0 0
    %1109 = vmatmul.mubr.bf16.gmra.mrb[0].mxu0 %v911
    %v1110 = vpop.f32.mrb[0].mxu0
    %v1111 = vadd.f32 0.0, %v1110
    %v1112 = vpop.f32.mrb[0].mxu0
    %v1113 = vpop.f32.mrb[0].mxu0
    %v1114 = vadd.f32 0.0, %v1113
    %v1115 = vpop.f32.mrb[0].mxu0
    %1116 = vmatprep.mubr.bf16.mxu0 0
    %1117 = vmatmul.mubr.bf16.gmra.mrb[0].mxu0 %v912
    %v1118 = vpop.f32.mrb[0].mxu0
    %v1119 = vadd.f32 0.0, %v1118
    %v1120 = vpop.f32.mrb[0].mxu0
    %v1121 = vpop.f32.mrb[0].mxu0
    %v1122 = vadd.f32 0.0, %v1121
    %v1123 = vpop.f32.mrb[0].mxu0
    %1124 = vmatprep.mubr.bf16.mxu0 0
    %1125 = vmatmul.mubr.bf16.gmra.mrb[0].mxu0 %v913
    %v1126 = vpop.f32.mrb[0].mxu0
    %v1127 = vadd.f32 0.0, %v1126
    %v1128 = vpop.f32.mrb[0].mxu0
    %v1129 = vpop.f32.mrb[0].mxu0
    %v1130 = vadd.f32 0.0, %v1129
    %v1131 = vpop.f32.mrb[0].mxu0
    %1132 = vmatprep.mubr.bf16.mxu0 0
    %1133 = vmatmul.mubr.bf16.gmra.mrb[0].mxu0 %v914
    %v1134 = vpop.f32.mrb[0].mxu0
    %v1135 = vadd.f32 0.0, %v1134
    %v1136 = vpop.f32.mrb[0].mxu0
    %v1137 = vpop.f32.mrb[0].mxu0
    %v1138 = vadd.f32 0.0, %v1137
    %v1139 = vpop.f32.mrb[0].mxu0
    %1140 = vdwg.mxu0
    %v1141 = vpack.c.bf16 %v1018, %v1015
    %v1142 = vpack.c.bf16 %v1026, %v1023
    %v1143 = vpack.c.bf16 %v1034, %v1031
    %v1144 = vpack.c.bf16 %v1042, %v1039
    %v1145 = vpack.c.bf16 %v1050, %v1047
    %v1146 = vpack.c.bf16 %v1058, %v1055
    %v1147 = vpack.c.bf16 %v1066, %v1063
    %v1148 = vpack.c.bf16 %v1074, %v1071
    %v1149 = vpack.c.bf16 %v1082, %v1079
    %v1150 = vpack.c.bf16 %v1090, %v1087
    %v1151 = vpack.c.bf16 %v1098, %v1095
    %v1152 = vpack.c.bf16 %v1106, %v1103
    %v1153 = vpack.c.bf16 %v1114, %v1111
    %v1154 = vpack.c.bf16 %v1122, %v1119
    %v1155 = vpack.c.bf16 %v1130, %v1127
    %v1156 = vpack.c.bf16 %v1138, %v1135
    %v1158 = vlaneseq
    %v1159 = vshrl.u32 %v1158, 7
    %v1160 = vsub.s32 0, %v1159
    %v1161 = vrot.slane %v931, %v1160
    %1163 = vmatprep.subr.bf16.mxu0 0
    %1164 = vmatpush1.bf16.msra.mxu0 %v1141
    %1165 = vmatprep.subr.bf16.mxu0 0
    %1166 = vmatpush1.bf16.msra.mxu0 %v1142
    %1167 = vmatprep.subr.bf16.mxu0 0
    %1168 = vmatpush1.bf16.msra.mxu0 %v1143
    %1169 = vmatprep.subr.bf16.mxu0 0
    %1170 = vmatpush1.bf16.msra.mxu0 %v1144
    %1171 = vmatprep.subr.bf16.mxu0 0
    %1172 = vmatpush1.bf16.msra.mxu0 %v1145
    %1173 = vmatprep.subr.bf16.mxu0 0
    %1174 = vmatpush1.bf16.msra.mxu0 %v1146
    %1175 = vmatprep.subr.bf16.mxu0 0
    %1176 = vmatpush1.bf16.msra.mxu0 %v1147
    %1177 = vmatprep.subr.bf16.mxu0 0
    %1178 = vmatpush1.bf16.msra.mxu0 %v1148
    %1179 = vmatprep.subr.bf16.mxu0 0
    %1180 = vmatpush1.bf16.msra.mxu0 %v1149
    %1181 = vmatprep.subr.bf16.mxu0 0
    %1182 = vmatpush1.bf16.msra.mxu0 %v1150
    %1183 = vmatprep.subr.bf16.mxu0 0
    %1184 = vmatpush1.bf16.msra.mxu0 %v1151
    %1185 = vmatprep.subr.bf16.mxu0 0
    %1186 = vmatpush1.bf16.msra.mxu0 %v1152
    %1187 = vmatprep.subr.bf16.mxu0 0
    %1188 = vmatpush1.bf16.msra.mxu0 %v1153
    %1189 = vmatprep.subr.bf16.mxu0 0
    %1190 = vmatpush1.bf16.msra.mxu0 %v1154
    %1191 = vmatprep.subr.bf16.mxu0 0
    %1192 = vmatpush1.bf16.msra.mxu0 %v1155
    %1193 = vmatprep.subr.bf16.mxu0 0
    %1194 = vmatpush1.bf16.msra.mxu0 %v1156
    %1195 = vmatprep.mubr.bf16.mxu0 %v643
    %1196 = vmatmul.mubr.bf16.gmra.mrb[0].mxu0 %v642
    %v1197 = vpop.f32.mrb[0].mxu0
    %v1198 = vadd.f32 %v1161, %v1197
    %v1199 = vpop.f32.mrb[0].mxu0
    %v1200 = vpop.f32.mrb[0].mxu0
    %v1201 = vadd.f32 %v1161, %v1200
    %v1202 = vpop.f32.mrb[0].mxu0
    %1203 = vmatprep.mubr.bf16.mxu0 %v645
    %1204 = vmatmul.mubr.bf16.gmra.mrb[0].mxu0 %v644
    %v1205 = vpop.f32.mrb[0].mxu0
    %v1206 = vadd.f32 %v1161, %v1205
    %v1207 = vpop.f32.mrb[0].mxu0
    %v1208 = vpop.f32.mrb[0].mxu0
    %v1209 = vadd.f32 %v1161, %v1208
    %v1210 = vpop.f32.mrb[0].mxu0
    %1211 = vmatprep.mubr.bf16.mxu0 %v647
    %1212 = vmatmul.mubr.bf16.gmra.mrb[0].mxu0 %v646
    %v1213 = vpop.f32.mrb[0].mxu0
    %v1214 = vadd.f32 %v1161, %v1213
    %v1215 = vpop.f32.mrb[0].mxu0
    %v1216 = vpop.f32.mrb[0].mxu0
    %v1217 = vadd.f32 %v1161, %v1216
    %v1218 = vpop.f32.mrb[0].mxu0
    %1219 = vmatprep.mubr.bf16.mxu0 %v649
    %1220 = vmatmul.mubr.bf16.gmra.mrb[0].mxu0 %v648
    %v1221 = vpop.f32.mrb[0].mxu0
    %v1222 = vadd.f32 %v1161, %v1221
    %v1223 = vpop.f32.mrb[0].mxu0
    %v1224 = vpop.f32.mrb[0].mxu0
    %v1225 = vadd.f32 %v1161, %v1224
    %v1226 = vpop.f32.mrb[0].mxu0
    %1227 = vmatprep.mubr.bf16.mxu0 %v651
    %1228 = vmatmul.mubr.bf16.gmra.mrb[0].mxu0 %v650
    %v1229 = vpop.f32.mrb[0].mxu0
    %v1230 = vadd.f32 %v1161, %v1229
    %v1231 = vpop.f32.mrb[0].mxu0
    %v1232 = vpop.f32.mrb[0].mxu0
    %v1233 = vadd.f32 %v1161, %v1232
    %v1234 = vpop.f32.mrb[0].mxu0
    %1235 = vmatprep.mubr.bf16.mxu0 %v653
    %1236 = vmatmul.mubr.bf16.gmra.mrb[0].mxu0 %v652
    %v1237 = vpop.f32.mrb[0].mxu0
    %v1238 = vadd.f32 %v1161, %v1237
    %v1239 = vpop.f32.mrb[0].mxu0
    %v1240 = vpop.f32.mrb[0].mxu0
    %v1241 = vadd.f32 %v1161, %v1240
    %v1242 = vpop.f32.mrb[0].mxu0
    %1243 = vmatprep.mubr.bf16.mxu0 %v655
    %1244 = vmatmul.mubr.bf16.gmra.mrb[0].mxu0 %v654
    %v1245 = vpop.f32.mrb[0].mxu0
    %v1246 = vadd.f32 %v1161, %v1245
    %v1247 = vpop.f32.mrb[0].mxu0
    %v1248 = vpop.f32.mrb[0].mxu0
    %v1249 = vadd.f32 %v1161, %v1248
    %v1250 = vpop.f32.mrb[0].mxu0
    %1251 = vmatprep.mubr.bf16.mxu0 %v657
    %1252 = vmatmul.mubr.bf16.gmra.mrb[0].mxu0 %v656
    %v1253 = vpop.f32.mrb[0].mxu0
    %v1254 = vadd.f32 %v1161, %v1253
    %v1255 = vpop.f32.mrb[0].mxu0
    %v1256 = vpop.f32.mrb[0].mxu0
    %v1257 = vadd.f32 %v1161, %v1256
    %v1258 = vpop.f32.mrb[0].mxu0
    %1259 = vmatprep.mubr.bf16.mxu0 %v659
    %1260 = vmatmul.mubr.bf16.gmra.mrb[0].mxu0 %v658
    %v1261 = vpop.f32.mrb[0].mxu0
    %v1262 = vadd.f32 %v1161, %v1261
    %v1263 = vpop.f32.mrb[0].mxu0
    %v1264 = vpop.f32.mrb[0].mxu0
    %v1265 = vadd.f32 %v1161, %v1264
    %v1266 = vpop.f32.mrb[0].mxu0
    %1267 = vmatprep.mubr.bf16.mxu0 %v661
    %1268 = vmatmul.mubr.bf16.gmra.mrb[0].mxu0 %v660
    %v1269 = vpop.f32.mrb[0].mxu0
    %v1270 = vadd.f32 %v1161, %v1269
    %v1271 = vpop.f32.mrb[0].mxu0
    %v1272 = vpop.f32.mrb[0].mxu0
    %v1273 = vadd.f32 %v1161, %v1272
    %v1274 = vpop.f32.mrb[0].mxu0
    %1275 = vmatprep.mubr.bf16.mxu0 %v663
    %1276 = vmatmul.mubr.bf16.gmra.mrb[0].mxu0 %v662
    %v1277 = vpop.f32.mrb[0].mxu0
    %v1278 = vadd.f32 %v1161, %v1277
    %v1279 = vpop.f32.mrb[0].mxu0
    %v1280 = vpop.f32.mrb[0].mxu0
    %v1281 = vadd.f32 %v1161, %v1280
    %v1282 = vpop.f32.mrb[0].mxu0
    %1283 = vmatprep.mubr.bf16.mxu0 %v665
    %1284 = vmatmul.mubr.bf16.gmra.mrb[0].mxu0 %v664
    %v1285 = vpop.f32.mrb[0].mxu0
    %v1286 = vadd.f32 %v1161, %v1285
    %v1287 = vpop.f32.mrb[0].mxu0
    %v1288 = vpop.f32.mrb[0].mxu0
    %v1289 = vadd.f32 %v1161, %v1288
    %v1290 = vpop.f32.mrb[0].mxu0
    %1291 = vmatprep.mubr.bf16.mxu0 %v667
    %1292 = vmatmul.mubr.bf16.gmra.mrb[0].mxu0 %v666
    %v1293 = vpop.f32.mrb[0].mxu0
    %v1294 = vadd.f32 %v1161, %v1293
    %v1295 = vpop.f32.mrb[0].mxu0
    %v1296 = vpop.f32.mrb[0].mxu0
    %v1297 = vadd.f32 %v1161, %v1296
    %v1298 = vpop.f32.mrb[0].mxu0
    %1299 = vmatprep.mubr.bf16.mxu0 %v669
    %1300 = vmatmul.mubr.bf16.gmra.mrb[0].mxu0 %v668
    %v1301 = vpop.f32.mrb[0].mxu0
    %v1302 = vadd.f32 %v1161, %v1301
    %v1303 = vpop.f32.mrb[0].mxu0
    %v1304 = vpop.f32.mrb[0].mxu0
    %v1305 = vadd.f32 %v1161, %v1304
    %v1306 = vpop.f32.mrb[0].mxu0
    %1307 = vmatprep.mubr.bf16.mxu0 %v671
    %1308 = vmatmul.mubr.bf16.gmra.mrb[0].mxu0 %v670
    %v1309 = vpop.f32.mrb[0].mxu0
    %v1310 = vadd.f32 %v1161, %v1309
    %v1311 = vpop.f32.mrb[0].mxu0
    %v1312 = vpop.f32.mrb[0].mxu0
    %v1313 = vadd.f32 %v1161, %v1312
    %v1314 = vpop.f32.mrb[0].mxu0
    %1315 = vmatprep.mubr.bf16.mxu0 %v673
    %1316 = vmatmul.mubr.bf16.gmra.mrb[0].mxu0 %v672
    %v1317 = vpop.f32.mrb[0].mxu0
    %v1318 = vadd.f32 %v1161, %v1317
    %v1319 = vpop.f32.mrb[0].mxu0
    %v1320 = vpop.f32.mrb[0].mxu0
    %v1321 = vadd.f32 %v1161, %v1320
    %v1322 = vpop.f32.mrb[0].mxu0
    %1323 = vdwg.mxu0
    %v1324 = vmax.f32 %v1198, 0.0
    %v1325 = vmax.f32 %v1201, 0.0
    %v1326 = vmax.f32 %v1206, 0.0
    %v1327 = vmax.f32 %v1209, 0.0
    %v1328 = vmax.f32 %v1214, 0.0
    %v1329 = vmax.f32 %v1217, 0.0
    %v1330 = vmax.f32 %v1222, 0.0
    %v1331 = vmax.f32 %v1225, 0.0
    %v1332 = vmax.f32 %v1230, 0.0
    %v1333 = vmax.f32 %v1233, 0.0
    %v1334 = vmax.f32 %v1238, 0.0
    %v1335 = vmax.f32 %v1241, 0.0
    %v1336 = vmax.f32 %v1246, 0.0
    %v1337 = vmax.f32 %v1249, 0.0
    %v1338 = vmax.f32 %v1254, 0.0
    %v1339 = vmax.f32 %v1257, 0.0
    %v1340 = vmax.f32 %v1262, 0.0
    %v1341 = vmax.f32 %v1265, 0.0
    %v1342 = vmax.f32 %v1270, 0.0
    %v1343 = vmax.f32 %v1273, 0.0
    %v1344 = vmax.f32 %v1278, 0.0
    %v1345 = vmax.f32 %v1281, 0.0
    %v1346 = vmax.f32 %v1286, 0.0
    %v1347 = vmax.f32 %v1289, 0.0
    %v1348 = vmax.f32 %v1294, 0.0
    %v1349 = vmax.f32 %v1297, 0.0
    %v1350 = vmax.f32 %v1302, 0.0
    %v1351 = vmax.f32 %v1305, 0.0
    %v1352 = vmax.f32 %v1310, 0.0
    %v1353 = vmax.f32 %v1313, 0.0
    %v1354 = vmax.f32 %v1318, 0.0
    %v1355 = vmax.f32 %v1321, 0.0
    %v1356 = vpack.c.bf16 %v1325, %v1324
    %v1357 = vpack.c.bf16 %v1327, %v1326
    %v1358 = vpack.c.bf16 %v1329, %v1328
    %v1359 = vpack.c.bf16 %v1331, %v1330
    %v1360 = vpack.c.bf16 %v1333, %v1332
    %v1361 = vpack.c.bf16 %v1335, %v1334
    %v1362 = vpack.c.bf16 %v1337, %v1336
    %v1363 = vpack.c.bf16 %v1339, %v1338
    %v1364 = vpack.c.bf16 %v1341, %v1340
    %v1365 = vpack.c.bf16 %v1343, %v1342
    %v1366 = vpack.c.bf16 %v1345, %v1344
    %v1367 = vpack.c.bf16 %v1347, %v1346
    %v1368 = vpack.c.bf16 %v1349, %v1348
    %v1369 = vpack.c.bf16 %v1351, %v1350
    %v1370 = vpack.c.bf16 %v1353, %v1352
    %v1371 = vpack.c.bf16 %v1355, %v1354
    %v1372 = vld [vmem:[#allocation10] sm:$0xf]
    %v1373 = vld [vmem:[#allocation10 + $0x4] sm:$0xf]
    %v1374 = vld [vmem:[#allocation10 + $0x8] sm:$0xf]
    %v1375 = vld [vmem:[#allocation10 + $0xc] sm:$0xf]
    %v1376 = vld [vmem:[#allocation10 + $0x10] sm:$0xf]
    %v1377 = vld [vmem:[#allocation10 + $0x14] sm:$0xf]
    %v1378 = vld [vmem:[#allocation10 + $0x18] sm:$0xf]
    %v1379 = vld [vmem:[#allocation10 + $0x1c] sm:$0xf]
    %v1380 = vld [vmem:[#allocation10 + $0x20] sm:$0xf]
    %v1381 = vld [vmem:[#allocation10 + $0x24] sm:$0xf]
    %v1382 = vld [vmem:[#allocation10 + $0x28] sm:$0xf]
    %v1383 = vld [vmem:[#allocation10 + $0x2c] sm:$0xf]
    %v1384 = vld [vmem:[#allocation10 + $0x30] sm:$0xf]
    %v1385 = vld [vmem:[#allocation10 + $0x34] sm:$0xf]
    %v1386 = vld [vmem:[#allocation10 + $0x38] sm:$0xf]
    %v1387 = vld [vmem:[#allocation10 + $0x3c] sm:$0xf]
    %v1388 = vld [vmem:[%s7] sm:$0x1]
    %v1405 = vunpack.c.l.b16 %v1372
    %v1406 = vunpack.c.l.b16 %v1373
    %v1407 = vunpack.c.l.b16 %v1374
    %v1408 = vunpack.c.l.b16 %v1375
    %v1409 = vunpack.c.l.b16 %v1376
    %v1410 = vunpack.c.l.b16 %v1377
    %v1411 = vunpack.c.l.b16 %v1378
    %v1412 = vunpack.c.l.b16 %v1379
    %v1413 = vunpack.c.l.b16 %v1380
    %v1414 = vunpack.c.l.b16 %v1381
    %v1415 = vunpack.c.l.b16 %v1382
    %v1416 = vunpack.c.l.b16 %v1383
    %v1417 = vunpack.c.l.b16 %v1384
    %v1418 = vunpack.c.l.b16 %v1385
    %v1419 = vunpack.c.l.b16 %v1386
    %v1420 = vunpack.c.l.b16 %v1387
    %v1421 = vpack.c.b16 %v1406, %v1405
    %v1422 = vpack.c.b16 %v1408, %v1407
    %v1423 = vpack.c.b16 %v1410, %v1409
    %v1424 = vpack.c.b16 %v1412, %v1411
    %v1425 = vpack.c.b16 %v1414, %v1413
    %v1426 = vpack.c.b16 %v1416, %v1415
    %v1427 = vpack.c.b16 %v1418, %v1417
    %v1428 = vpack.c.b16 %v1420, %v1419
    %1437 = vmatprep.subr.bf16.mxu0 0
    %1438 = vmatpush1.bf16.msra.mxu0 %v1421
    %1439 = vmatprep.subr.bf16.mxu0 0
    %1440 = vmatpush1.bf16.msra.mxu0 %v1422
    %1441 = vmatprep.subr.bf16.mxu0 0
    %1442 = vmatpush1.bf16.msra.mxu0 %v1423
    %1443 = vmatprep.subr.bf16.mxu0 0
    %1444 = vmatpush1.bf16.msra.mxu0 %v1424
    %1445 = vmatprep.subr.bf16.mxu0 0
    %1446 = vmatpush1.bf16.msra.mxu0 %v1425
    %1447 = vmatprep.subr.bf16.mxu0 0
    %1448 = vmatpush1.bf16.msra.mxu0 %v1426
    %1449 = vmatprep.subr.bf16.mxu0 0
    %1450 = vmatpush1.bf16.msra.mxu0 %v1427
    %1451 = vmatprep.subr.bf16.mxu0 0
    %1452 = vmatpush1.bf16.msra.mxu0 %v1428
    %1453 = vmatprep.subr.bf16.mxu0 0
    %1454 = vmatpush1.bf16.msra.mxu0 0
    %1455 = vmatprep.subr.bf16.mxu0 0
    %1456 = vmatpush1.bf16.msra.mxu0 0
    %1457 = vmatprep.subr.bf16.mxu0 0
    %1458 = vmatpush1.bf16.msra.mxu0 0
    %1459 = vmatprep.subr.bf16.mxu0 0
    %1460 = vmatpush1.bf16.msra.mxu0 0
    %1461 = vmatprep.subr.bf16.mxu0 0
    %1462 = vmatpush1.bf16.msra.mxu0 0
    %1463 = vmatprep.subr.bf16.mxu0 0
    %1464 = vmatpush1.bf16.msra.mxu0 0
    %1465 = vmatprep.subr.bf16.mxu0 0
    %1466 = vmatpush1.bf16.msra.mxu0 0
    %1467 = vmatprep.subr.bf16.mxu0 0
    %1468 = vmatpush1.bf16.msra.mxu0 0
    %1469 = vmatprep.mubr.bf16.mxu0 0
    %1470 = vmatmul.mubr.bf16.gmra.mrb[0].mxu0 %v1356
    %v1471 = vpop.f32.mrb[0].mxu0
    %v1472 = vadd.f32 0.0, %v1471
    %v1473 = vpop.f32.mrb[0].mxu0
    %v1474 = vpop.f32.mrb[0].mxu0
    %v1475 = vadd.f32 0.0, %v1474
    %v1476 = vpop.f32.mrb[0].mxu0
    %1477 = vmatprep.mubr.bf16.mxu0 0
    %1478 = vmatmul.mubr.bf16.gmra.mrb[0].mxu0 %v1357
    %v1479 = vpop.f32.mrb[0].mxu0
    %v1480 = vadd.f32 0.0, %v1479
    %v1481 = vpop.f32.mrb[0].mxu0
    %v1482 = vpop.f32.mrb[0].mxu0
    %v1483 = vadd.f32 0.0, %v1482
    %v1484 = vpop.f32.mrb[0].mxu0
    %1485 = vmatprep.mubr.bf16.mxu0 0
    %1486 = vmatmul.mubr.bf16.gmra.mrb[0].mxu0 %v1358
    %v1487 = vpop.f32.mrb[0].mxu0
    %v1488 = vadd.f32 0.0, %v1487
    %v1489 = vpop.f32.mrb[0].mxu0
    %v1490 = vpop.f32.mrb[0].mxu0
    %v1491 = vadd.f32 0.0, %v1490
    %v1492 = vpop.f32.mrb[0].mxu0
    %1493 = vmatprep.mubr.bf16.mxu0 0
    %1494 = vmatmul.mubr.bf16.gmra.mrb[0].mxu0 %v1359
    %v1495 = vpop.f32.mrb[0].mxu0
    %v1496 = vadd.f32 0.0, %v1495
    %v1497 = vpop.f32.mrb[0].mxu0
    %v1498 = vpop.f32.mrb[0].mxu0
    %v1499 = vadd.f32 0.0, %v1498
    %v1500 = vpop.f32.mrb[0].mxu0
    %1501 = vmatprep.mubr.bf16.mxu0 0
    %1502 = vmatmul.mubr.bf16.gmra.mrb[0].mxu0 %v1360
    %v1503 = vpop.f32.mrb[0].mxu0
    %v1504 = vadd.f32 0.0, %v1503
    %v1505 = vpop.f32.mrb[0].mxu0
    %v1506 = vpop.f32.mrb[0].mxu0
    %v1507 = vadd.f32 0.0, %v1506
    %v1508 = vpop.f32.mrb[0].mxu0
    %1509 = vmatprep.mubr.bf16.mxu0 0
    %1510 = vmatmul.mubr.bf16.gmra.mrb[0].mxu0 %v1361
    %v1511 = vpop.f32.mrb[0].mxu0
    %v1512 = vadd.f32 0.0, %v1511
    %v1513 = vpop.f32.mrb[0].mxu0
    %v1514 = vpop.f32.mrb[0].mxu0
    %v1515 = vadd.f32 0.0, %v1514
    %v1516 = vpop.f32.mrb[0].mxu0
    %1517 = vmatprep.mubr.bf16.mxu0 0
    %1518 = vmatmul.mubr.bf16.gmra.mrb[0].mxu0 %v1362
    %v1519 = vpop.f32.mrb[0].mxu0
    %v1520 = vadd.f32 0.0, %v1519
    %v1521 = vpop.f32.mrb[0].mxu0
    %v1522 = vpop.f32.mrb[0].mxu0
    %v1523 = vadd.f32 0.0, %v1522
    %v1524 = vpop.f32.mrb[0].mxu0
    %1525 = vmatprep.mubr.bf16.mxu0 0
    %1526 = vmatmul.mubr.bf16.gmra.mrb[0].mxu0 %v1363
    %v1527 = vpop.f32.mrb[0].mxu0
    %v1528 = vadd.f32 0.0, %v1527
    %v1529 = vpop.f32.mrb[0].mxu0
    %v1530 = vpop.f32.mrb[0].mxu0
    %v1531 = vadd.f32 0.0, %v1530
    %v1532 = vpop.f32.mrb[0].mxu0
    %1533 = vmatprep.mubr.bf16.mxu0 0
    %1534 = vmatmul.mubr.bf16.gmra.mrb[0].mxu0 %v1364
    %v1535 = vpop.f32.mrb[0].mxu0
    %v1536 = vadd.f32 0.0, %v1535
    %v1537 = vpop.f32.mrb[0].mxu0
    %v1538 = vpop.f32.mrb[0].mxu0
    %v1539 = vadd.f32 0.0, %v1538
    %v1540 = vpop.f32.mrb[0].mxu0
    %1541 = vmatprep.mubr.bf16.mxu0 0
    %1542 = vmatmul.mubr.bf16.gmra.mrb[0].mxu0 %v1365
    %v1543 = vpop.f32.mrb[0].mxu0
    %v1544 = vadd.f32 0.0, %v1543
    %v1545 = vpop.f32.mrb[0].mxu0
    %v1546 = vpop.f32.mrb[0].mxu0
    %v1547 = vadd.f32 0.0, %v1546
    %v1548 = vpop.f32.mrb[0].mxu0
    %1549 = vmatprep.mubr.bf16.mxu0 0
    %1550 = vmatmul.mubr.bf16.gmra.mrb[0].mxu0 %v1366
    %v1551 = vpop.f32.mrb[0].mxu0
    %v1552 = vadd.f32 0.0, %v1551
    %v1553 = vpop.f32.mrb[0].mxu0
    %v1554 = vpop.f32.mrb[0].mxu0
    %v1555 = vadd.f32 0.0, %v1554
    %v1556 = vpop.f32.mrb[0].mxu0
    %1557 = vmatprep.mubr.bf16.mxu0 0
    %1558 = vmatmul.mubr.bf16.gmra.mrb[0].mxu0 %v1367
    %v1559 = vpop.f32.mrb[0].mxu0
    %v1560 = vadd.f32 0.0, %v1559
    %v1561 = vpop.f32.mrb[0].mxu0
    %v1562 = vpop.f32.mrb[0].mxu0
    %v1563 = vadd.f32 0.0, %v1562
    %v1564 = vpop.f32.mrb[0].mxu0
    %1565 = vmatprep.mubr.bf16.mxu0 0
    %1566 = vmatmul.mubr.bf16.gmra.mrb[0].mxu0 %v1368
    %v1567 = vpop.f32.mrb[0].mxu0
    %v1568 = vadd.f32 0.0, %v1567
    %v1569 = vpop.f32.mrb[0].mxu0
    %v1570 = vpop.f32.mrb[0].mxu0
    %v1571 = vadd.f32 0.0, %v1570
    %v1572 = vpop.f32.mrb[0].mxu0
    %1573 = vmatprep.mubr.bf16.mxu0 0
    %1574 = vmatmul.mubr.bf16.gmra.mrb[0].mxu0 %v1369
    %v1575 = vpop.f32.mrb[0].mxu0
    %v1576 = vadd.f32 0.0, %v1575
    %v1577 = vpop.f32.mrb[0].mxu0
    %v1578 = vpop.f32.mrb[0].mxu0
    %v1579 = vadd.f32 0.0, %v1578
    %v1580 = vpop.f32.mrb[0].mxu0
    %1581 = vmatprep.mubr.bf16.mxu0 0
    %1582 = vmatmul.mubr.bf16.gmra.mrb[0].mxu0 %v1370
    %v1583 = vpop.f32.mrb[0].mxu0
    %v1584 = vadd.f32 0.0, %v1583
    %v1585 = vpop.f32.mrb[0].mxu0
    %v1586 = vpop.f32.mrb[0].mxu0
    %v1587 = vadd.f32 0.0, %v1586
    %v1588 = vpop.f32.mrb[0].mxu0
    %1589 = vmatprep.mubr.bf16.mxu0 0
    %1590 = vmatmul.mubr.bf16.gmra.mrb[0].mxu0 %v1371
    %v1591 = vpop.f32.mrb[0].mxu0
    %v1592 = vadd.f32 0.0, %v1591
    %v1593 = vpop.f32.mrb[0].mxu0
    %v1594 = vpop.f32.mrb[0].mxu0
    %v1595 = vadd.f32 0.0, %v1594
    %v1596 = vpop.f32.mrb[0].mxu0
    %1597 = vdwg.mxu0
    %v1598 = vpack.c.bf16 %v1475, %v1472
    %v1599 = vpack.c.bf16 %v1483, %v1480
    %v1600 = vpack.c.bf16 %v1491, %v1488
    %v1601 = vpack.c.bf16 %v1499, %v1496
    %v1602 = vpack.c.bf16 %v1507, %v1504
    %v1603 = vpack.c.bf16 %v1515, %v1512
    %v1604 = vpack.c.bf16 %v1523, %v1520
    %v1605 = vpack.c.bf16 %v1531, %v1528
    %v1606 = vpack.c.bf16 %v1539, %v1536
    %v1607 = vpack.c.bf16 %v1547, %v1544
    %v1608 = vpack.c.bf16 %v1555, %v1552
    %v1609 = vpack.c.bf16 %v1563, %v1560
    %v1610 = vpack.c.bf16 %v1571, %v1568
    %v1611 = vpack.c.bf16 %v1579, %v1576
    %v1612 = vpack.c.bf16 %v1587, %v1584
    %v1613 = vpack.c.bf16 %v1595, %v1592
    %v1615 = vlaneseq
    %v1616 = vshrl.u32 %v1615, 7
    %v1617 = vsub.s32 0, %v1616
    %v1618 = vrot.slane %v1388, %v1617
    %1620 = vmatprep.subr.bf16.mxu0 0
    %1621 = vmatpush1.bf16.msra.mxu0 %v1598
    %1622 = vmatprep.subr.bf16.mxu0 0
    %1623 = vmatpush1.bf16.msra.mxu0 %v1599
    %1624 = vmatprep.subr.bf16.mxu0 0
    %1625 = vmatpush1.bf16.msra.mxu0 %v1600
    %1626 = vmatprep.subr.bf16.mxu0 0
    %1627 = vmatpush1.bf16.msra.mxu0 %v1601
    %1628 = vmatprep.subr.bf16.mxu0 0
    %1629 = vmatpush1.bf16.msra.mxu0 %v1602
    %1630 = vmatprep.subr.bf16.mxu0 0
    %1631 = vmatpush1.bf16.msra.mxu0 %v1603
    %1632 = vmatprep.subr.bf16.mxu0 0
    %1633 = vmatpush1.bf16.msra.mxu0 %v1604
    %1634 = vmatprep.subr.bf16.mxu0 0
    %1635 = vmatpush1.bf16.msra.mxu0 %v1605
    %1636 = vmatprep.subr.bf16.mxu0 0
    %1637 = vmatpush1.bf16.msra.mxu0 %v1606
    %1638 = vmatprep.subr.bf16.mxu0 0
    %1639 = vmatpush1.bf16.msra.mxu0 %v1607
    %1640 = vmatprep.subr.bf16.mxu0 0
    %1641 = vmatpush1.bf16.msra.mxu0 %v1608
    %1642 = vmatprep.subr.bf16.mxu0 0
    %1643 = vmatpush1.bf16.msra.mxu0 %v1609
    %1644 = vmatprep.subr.bf16.mxu0 0
    %1645 = vmatpush1.bf16.msra.mxu0 %v1610
    %1646 = vmatprep.subr.bf16.mxu0 0
    %1647 = vmatpush1.bf16.msra.mxu0 %v1611
    %1648 = vmatprep.subr.bf16.mxu0 0
    %1649 = vmatpush1.bf16.msra.mxu0 %v1612
    %1650 = vmatprep.subr.bf16.mxu0 0
    %1651 = vmatpush1.bf16.msra.mxu0 %v1613
    %1652 = vmatprep.mubr.bf16.mxu0 %v643
    %1653 = vmatmul.mubr.bf16.gmra.mrb[0].mxu0 %v642
    %v1654 = vpop.f32.mrb[0].mxu0
    %v1655 = vadd.f32 %v1618, %v1654
    %v1656 = vpop.f32.mrb[0].mxu0
    %v1657 = vpop.f32.mrb[0].mxu0
    %v1658 = vadd.f32 %v1618, %v1657
    %v1659 = vpop.f32.mrb[0].mxu0
    %1660 = vmatprep.mubr.bf16.mxu0 %v645
    %1661 = vmatmul.mubr.bf16.gmra.mrb[0].mxu0 %v644
    %v1662 = vpop.f32.mrb[0].mxu0
    %v1663 = vadd.f32 %v1618, %v1662
    %v1664 = vpop.f32.mrb[0].mxu0
    %v1665 = vpop.f32.mrb[0].mxu0
    %v1666 = vadd.f32 %v1618, %v1665
    %v1667 = vpop.f32.mrb[0].mxu0
    %1668 = vmatprep.mubr.bf16.mxu0 %v647
    %1669 = vmatmul.mubr.bf16.gmra.mrb[0].mxu0 %v646
    %v1670 = vpop.f32.mrb[0].mxu0
    %v1671 = vadd.f32 %v1618, %v1670
    %v1672 = vpop.f32.mrb[0].mxu0
    %v1673 = vpop.f32.mrb[0].mxu0
    %v1674 = vadd.f32 %v1618, %v1673
    %v1675 = vpop.f32.mrb[0].mxu0
    %1676 = vmatprep.mubr.bf16.mxu0 %v649
    %1677 = vmatmul.mubr.bf16.gmra.mrb[0].mxu0 %v648
    %v1678 = vpop.f32.mrb[0].mxu0
    %v1679 = vadd.f32 %v1618, %v1678
    %v1680 = vpop.f32.mrb[0].mxu0
    %v1681 = vpop.f32.mrb[0].mxu0
    %v1682 = vadd.f32 %v1618, %v1681
    %v1683 = vpop.f32.mrb[0].mxu0
    %1684 = vmatprep.mubr.bf16.mxu0 %v651
    %1685 = vmatmul.mubr.bf16.gmra.mrb[0].mxu0 %v650
    %v1686 = vpop.f32.mrb[0].mxu0
    %v1687 = vadd.f32 %v1618, %v1686
    %v1688 = vpop.f32.mrb[0].mxu0
    %v1689 = vpop.f32.mrb[0].mxu0
    %v1690 = vadd.f32 %v1618, %v1689
    %v1691 = vpop.f32.mrb[0].mxu0
    %1692 = vmatprep.mubr.bf16.mxu0 %v653
    %1693 = vmatmul.mubr.bf16.gmra.mrb[0].mxu0 %v652
    %v1694 = vpop.f32.mrb[0].mxu0
    %v1695 = vadd.f32 %v1618, %v1694
    %v1696 = vpop.f32.mrb[0].mxu0
    %v1697 = vpop.f32.mrb[0].mxu0
    %v1698 = vadd.f32 %v1618, %v1697
    %v1699 = vpop.f32.mrb[0].mxu0
    %1700 = vmatprep.mubr.bf16.mxu0 %v655
    %1701 = vmatmul.mubr.bf16.gmra.mrb[0].mxu0 %v654
    %v1702 = vpop.f32.mrb[0].mxu0
    %v1703 = vadd.f32 %v1618, %v1702
    %v1704 = vpop.f32.mrb[0].mxu0
    %v1705 = vpop.f32.mrb[0].mxu0
    %v1706 = vadd.f32 %v1618, %v1705
    %v1707 = vpop.f32.mrb[0].mxu0
    %1708 = vmatprep.mubr.bf16.mxu0 %v657
    %1709 = vmatmul.mubr.bf16.gmra.mrb[0].mxu0 %v656
    %v1710 = vpop.f32.mrb[0].mxu0
    %v1711 = vadd.f32 %v1618, %v1710
    %v1712 = vpop.f32.mrb[0].mxu0
    %v1713 = vpop.f32.mrb[0].mxu0
    %v1714 = vadd.f32 %v1618, %v1713
    %v1715 = vpop.f32.mrb[0].mxu0
    %1716 = vmatprep.mubr.bf16.mxu0 %v659
    %1717 = vmatmul.mubr.bf16.gmra.mrb[0].mxu0 %v658
    %v1718 = vpop.f32.mrb[0].mxu0
    %v1719 = vadd.f32 %v1618, %v1718
    %v1720 = vpop.f32.mrb[0].mxu0
    %v1721 = vpop.f32.mrb[0].mxu0
    %v1722 = vadd.f32 %v1618, %v1721
    %v1723 = vpop.f32.mrb[0].mxu0
    %1724 = vmatprep.mubr.bf16.mxu0 %v661
    %1725 = vmatmul.mubr.bf16.gmra.mrb[0].mxu0 %v660
    %v1726 = vpop.f32.mrb[0].mxu0
    %v1727 = vadd.f32 %v1618, %v1726
    %v1728 = vpop.f32.mrb[0].mxu0
    %v1729 = vpop.f32.mrb[0].mxu0
    %v1730 = vadd.f32 %v1618, %v1729
    %v1731 = vpop.f32.mrb[0].mxu0
    %1732 = vmatprep.mubr.bf16.mxu0 %v663
    %1733 = vmatmul.mubr.bf16.gmra.mrb[0].mxu0 %v662
    %v1734 = vpop.f32.mrb[0].mxu0
    %v1735 = vadd.f32 %v1618, %v1734
    %v1736 = vpop.f32.mrb[0].mxu0
    %v1737 = vpop.f32.mrb[0].mxu0
    %v1738 = vadd.f32 %v1618, %v1737
    %v1739 = vpop.f32.mrb[0].mxu0
    %1740 = vmatprep.mubr.bf16.mxu0 %v665
    %1741 = vmatmul.mubr.bf16.gmra.mrb[0].mxu0 %v664
    %v1742 = vpop.f32.mrb[0].mxu0
    %v1743 = vadd.f32 %v1618, %v1742
    %v1744 = vpop.f32.mrb[0].mxu0
    %v1745 = vpop.f32.mrb[0].mxu0
    %v1746 = vadd.f32 %v1618, %v1745
    %v1747 = vpop.f32.mrb[0].mxu0
    %1748 = vmatprep.mubr.bf16.mxu0 %v667
    %1749 = vmatmul.mubr.bf16.gmra.mrb[0].mxu0 %v666
    %v1750 = vpop.f32.mrb[0].mxu0
    %v1751 = vadd.f32 %v1618, %v1750
    %v1752 = vpop.f32.mrb[0].mxu0
    %v1753 = vpop.f32.mrb[0].mxu0
    %v1754 = vadd.f32 %v1618, %v1753
    %v1755 = vpop.f32.mrb[0].mxu0
    %1756 = vmatprep.mubr.bf16.mxu0 %v669
    %1757 = vmatmul.mubr.bf16.gmra.mrb[0].mxu0 %v668
    %v1758 = vpop.f32.mrb[0].mxu0
    %v1759 = vadd.f32 %v1618, %v1758
    %v1760 = vpop.f32.mrb[0].mxu0
    %v1761 = vpop.f32.mrb[0].mxu0
    %v1762 = vadd.f32 %v1618, %v1761
    %v1763 = vpop.f32.mrb[0].mxu0
    %1764 = vmatprep.mubr.bf16.mxu0 %v671
    %1765 = vmatmul.mubr.bf16.gmra.mrb[0].mxu0 %v670
    %v1766 = vpop.f32.mrb[0].mxu0
    %v1767 = vadd.f32 %v1618, %v1766
    %v1768 = vpop.f32.mrb[0].mxu0
    %v1769 = vpop.f32.mrb[0].mxu0
    %v1770 = vadd.f32 %v1618, %v1769
    %v1771 = vpop.f32.mrb[0].mxu0
    %1772 = vmatprep.mubr.bf16.mxu0 %v673
    %1773 = vmatmul.mubr.bf16.gmra.mrb[0].mxu0 %v672
    %v1774 = vpop.f32.mrb[0].mxu0
    %v1775 = vadd.f32 %v1618, %v1774
    %v1776 = vpop.f32.mrb[0].mxu0
    %v1777 = vpop.f32.mrb[0].mxu0
    %v1778 = vadd.f32 %v1618, %v1777
    %v1779 = vpop.f32.mrb[0].mxu0
    %1780 = vdwg.mxu0
    %v1781 = vmax.f32 %v1655, 0.0
    %v1782 = vmax.f32 %v1658, 0.0
    %v1783 = vmax.f32 %v1663, 0.0
    %v1784 = vmax.f32 %v1666, 0.0
    %v1785 = vmax.f32 %v1671, 0.0
    %v1786 = vmax.f32 %v1674, 0.0
    %v1787 = vmax.f32 %v1679, 0.0
    %v1788 = vmax.f32 %v1682, 0.0
    %v1789 = vmax.f32 %v1687, 0.0
    %v1790 = vmax.f32 %v1690, 0.0
    %v1791 = vmax.f32 %v1695, 0.0
    %v1792 = vmax.f32 %v1698, 0.0
    %v1793 = vmax.f32 %v1703, 0.0
    %v1794 = vmax.f32 %v1706, 0.0
    %v1795 = vmax.f32 %v1711, 0.0
    %v1796 = vmax.f32 %v1714, 0.0
    %v1797 = vmax.f32 %v1719, 0.0
    %v1798 = vmax.f32 %v1722, 0.0
    %v1799 = vmax.f32 %v1727, 0.0
    %v1800 = vmax.f32 %v1730, 0.0
    %v1801 = vmax.f32 %v1735, 0.0
    %v1802 = vmax.f32 %v1738, 0.0
    %v1803 = vmax.f32 %v1743, 0.0
    %v1804 = vmax.f32 %v1746, 0.0
    %v1805 = vmax.f32 %v1751, 0.0
    %v1806 = vmax.f32 %v1754, 0.0
    %v1807 = vmax.f32 %v1759, 0.0
    %v1808 = vmax.f32 %v1762, 0.0
    %v1809 = vmax.f32 %v1767, 0.0
    %v1810 = vmax.f32 %v1770, 0.0
    %v1811 = vmax.f32 %v1775, 0.0
    %v1812 = vmax.f32 %v1778, 0.0
    %v1813 = vpack.c.bf16 %v1782, %v1781
    %v1814 = vpack.c.bf16 %v1784, %v1783
    %v1815 = vpack.c.bf16 %v1786, %v1785
    %v1816 = vpack.c.bf16 %v1788, %v1787
    %v1817 = vpack.c.bf16 %v1790, %v1789
    %v1818 = vpack.c.bf16 %v1792, %v1791
    %v1819 = vpack.c.bf16 %v1794, %v1793
    %v1820 = vpack.c.bf16 %v1796, %v1795
    %v1821 = vpack.c.bf16 %v1798, %v1797
    %v1822 = vpack.c.bf16 %v1800, %v1799
    %v1823 = vpack.c.bf16 %v1802, %v1801
    %v1824 = vpack.c.bf16 %v1804, %v1803
    %v1825 = vpack.c.bf16 %v1806, %v1805
    %v1826 = vpack.c.bf16 %v1808, %v1807
    %v1827 = vpack.c.bf16 %v1810, %v1809
    %v1828 = vpack.c.bf16 %v1812, %v1811
    %v1829 = vld [vmem:[#allocation11] sm:$0xf]
    %v1830 = vld [vmem:[#allocation11 + $0x4] sm:$0xf]
    %v1831 = vld [vmem:[#allocation11 + $0x8] sm:$0xf]
    %v1832 = vld [vmem:[#allocation11 + $0xc] sm:$0xf]
    %v1833 = vld [vmem:[#allocation11 + $0x10] sm:$0xf]
    %v1834 = vld [vmem:[#allocation11 + $0x14] sm:$0xf]
    %v1835 = vld [vmem:[#allocation11 + $0x18] sm:$0xf]
    %v1836 = vld [vmem:[#allocation11 + $0x1c] sm:$0xf]
    %v1837 = vld [vmem:[#allocation11 + $0x20] sm:$0xf]
    %v1838 = vld [vmem:[#allocation11 + $0x24] sm:$0xf]
    %v1839 = vld [vmem:[#allocation11 + $0x28] sm:$0xf]
    %v1840 = vld [vmem:[#allocation11 + $0x2c] sm:$0xf]
    %v1841 = vld [vmem:[#allocation11 + $0x30] sm:$0xf]
    %v1842 = vld [vmem:[#allocation11 + $0x34] sm:$0xf]
    %v1843 = vld [vmem:[#allocation11 + $0x38] sm:$0xf]
    %v1844 = vld [vmem:[#allocation11 + $0x3c] sm:$0xf]
    %v1845 = vld [vmem:[%s9] sm:$0x1]
    %v1862 = vunpack.c.l.b16 %v1829
    %v1863 = vunpack.c.l.b16 %v1830
    %v1864 = vunpack.c.l.b16 %v1831
    %v1865 = vunpack.c.l.b16 %v1832
    %v1866 = vunpack.c.l.b16 %v1833
    %v1867 = vunpack.c.l.b16 %v1834
    %v1868 = vunpack.c.l.b16 %v1835
    %v1869 = vunpack.c.l.b16 %v1836
    %v1870 = vunpack.c.l.b16 %v1837
    %v1871 = vunpack.c.l.b16 %v1838
    %v1872 = vunpack.c.l.b16 %v1839
    %v1873 = vunpack.c.l.b16 %v1840
    %v1874 = vunpack.c.l.b16 %v1841
    %v1875 = vunpack.c.l.b16 %v1842
    %v1876 = vunpack.c.l.b16 %v1843
    %v1877 = vunpack.c.l.b16 %v1844
    %v1878 = vpack.c.b16 %v1863, %v1862
    %v1879 = vpack.c.b16 %v1865, %v1864
    %v1880 = vpack.c.b16 %v1867, %v1866
    %v1881 = vpack.c.b16 %v1869, %v1868
    %v1882 = vpack.c.b16 %v1871, %v1870
    %v1883 = vpack.c.b16 %v1873, %v1872
    %v1884 = vpack.c.b16 %v1875, %v1874
    %v1885 = vpack.c.b16 %v1877, %v1876
    %1894 = vmatprep.subr.bf16.mxu0 0
    %1895 = vmatpush1.bf16.msra.mxu0 %v1878
    %1896 = vmatprep.subr.bf16.mxu0 0
    %1897 = vmatpush1.bf16.msra.mxu0 %v1879
    %1898 = vmatprep.subr.bf16.mxu0 0
    %1899 = vmatpush1.bf16.msra.mxu0 %v1880
    %1900 = vmatprep.subr.bf16.mxu0 0
    %1901 = vmatpush1.bf16.msra.mxu0 %v1881
    %1902 = vmatprep.subr.bf16.mxu0 0
    %1903 = vmatpush1.bf16.msra.mxu0 %v1882
    %1904 = vmatprep.subr.bf16.mxu0 0
    %1905 = vmatpush1.bf16.msra.mxu0 %v1883
    %1906 = vmatprep.subr.bf16.mxu0 0
    %1907 = vmatpush1.bf16.msra.mxu0 %v1884
    %1908 = vmatprep.subr.bf16.mxu0 0
    %1909 = vmatpush1.bf16.msra.mxu0 %v1885
    %1910 = vmatprep.subr.bf16.mxu0 0
    %1911 = vmatpush1.bf16.msra.mxu0 0
    %1912 = vmatprep.subr.bf16.mxu0 0
    %1913 = vmatpush1.bf16.msra.mxu0 0
    %1914 = vmatprep.subr.bf16.mxu0 0
    %1915 = vmatpush1.bf16.msra.mxu0 0
    %1916 = vmatprep.subr.bf16.mxu0 0
    %1917 = vmatpush1.bf16.msra.mxu0 0
    %1918 = vmatprep.subr.bf16.mxu0 0
    %1919 = vmatpush1.bf16.msra.mxu0 0
    %1920 = vmatprep.subr.bf16.mxu0 0
    %1921 = vmatpush1.bf16.msra.mxu0 0
    %1922 = vmatprep.subr.bf16.mxu0 0
    %1923 = vmatpush1.bf16.msra.mxu0 0
    %1924 = vmatprep.subr.bf16.mxu0 0
    %1925 = vmatpush1.bf16.msra.mxu0 0
    %1926 = vmatprep.mubr.bf16.mxu0 0
    %1927 = vmatmul.mubr.bf16.gmra.mrb[0].mxu0 %v1813
    %v1928 = vpop.f32.mrb[0].mxu0
    %v1929 = vadd.f32 0.0, %v1928
    %v1930 = vpop.f32.mrb[0].mxu0
    %v1931 = vpop.f32.mrb[0].mxu0
    %v1932 = vadd.f32 0.0, %v1931
    %v1933 = vpop.f32.mrb[0].mxu0
    %1934 = vmatprep.mubr.bf16.mxu0 0
    %1935 = vmatmul.mubr.bf16.gmra.mrb[0].mxu0 %v1814
    %v1936 = vpop.f32.mrb[0].mxu0
    %v1937 = vadd.f32 0.0, %v1936
    %v1938 = vpop.f32.mrb[0].mxu0
    %v1939 = vpop.f32.mrb[0].mxu0
    %v1940 = vadd.f32 0.0, %v1939
    %v1941 = vpop.f32.mrb[0].mxu0
    %1942 = vmatprep.mubr.bf16.mxu0 0
    %1943 = vmatmul.mubr.bf16.gmra.mrb[0].mxu0 %v1815
    %v1944 = vpop.f32.mrb[0].mxu0
    %v1945 = vadd.f32 0.0, %v1944
    %v1946 = vpop.f32.mrb[0].mxu0
    %v1947 = vpop.f32.mrb[0].mxu0
    %v1948 = vadd.f32 0.0, %v1947
    %v1949 = vpop.f32.mrb[0].mxu0
    %1950 = vmatprep.mubr.bf16.mxu0 0
    %1951 = vmatmul.mubr.bf16.gmra.mrb[0].mxu0 %v1816
    %v1952 = vpop.f32.mrb[0].mxu0
    %v1953 = vadd.f32 0.0, %v1952
    %v1954 = vpop.f32.mrb[0].mxu0
    %v1955 = vpop.f32.mrb[0].mxu0
    %v1956 = vadd.f32 0.0, %v1955
    %v1957 = vpop.f32.mrb[0].mxu0
    %1958 = vmatprep.mubr.bf16.mxu0 0
    %1959 = vmatmul.mubr.bf16.gmra.mrb[0].mxu0 %v1817
    %v1960 = vpop.f32.mrb[0].mxu0
    %v1961 = vadd.f32 0.0, %v1960
    %v1962 = vpop.f32.mrb[0].mxu0
    %v1963 = vpop.f32.mrb[0].mxu0
    %v1964 = vadd.f32 0.0, %v1963
    %v1965 = vpop.f32.mrb[0].mxu0
    %1966 = vmatprep.mubr.bf16.mxu0 0
    %1967 = vmatmul.mubr.bf16.gmra.mrb[0].mxu0 %v1818
    %v1968 = vpop.f32.mrb[0].mxu0
    %v1969 = vadd.f32 0.0, %v1968
    %v1970 = vpop.f32.mrb[0].mxu0
    %v1971 = vpop.f32.mrb[0].mxu0
    %v1972 = vadd.f32 0.0, %v1971
    %v1973 = vpop.f32.mrb[0].mxu0
    %1974 = vmatprep.mubr.bf16.mxu0 0
    %1975 = vmatmul.mubr.bf16.gmra.mrb[0].mxu0 %v1819
    %v1976 = vpop.f32.mrb[0].mxu0
    %v1977 = vadd.f32 0.0, %v1976
    %v1978 = vpop.f32.mrb[0].mxu0
    %v1979 = vpop.f32.mrb[0].mxu0
    %v1980 = vadd.f32 0.0, %v1979
    %v1981 = vpop.f32.mrb[0].mxu0
    %1982 = vmatprep.mubr.bf16.mxu0 0
    %1983 = vmatmul.mubr.bf16.gmra.mrb[0].mxu0 %v1820
    %v1984 = vpop.f32.mrb[0].mxu0
    %v1985 = vadd.f32 0.0, %v1984
    %v1986 = vpop.f32.mrb[0].mxu0
    %v1987 = vpop.f32.mrb[0].mxu0
    %v1988 = vadd.f32 0.0, %v1987
    %v1989 = vpop.f32.mrb[0].mxu0
    %1990 = vmatprep.mubr.bf16.mxu0 0
    %1991 = vmatmul.mubr.bf16.gmra.mrb[0].mxu0 %v1821
    %v1992 = vpop.f32.mrb[0].mxu0
    %v1993 = vadd.f32 0.0, %v1992
    %v1994 = vpop.f32.mrb[0].mxu0
    %v1995 = vpop.f32.mrb[0].mxu0
    %v1996 = vadd.f32 0.0, %v1995
    %v1997 = vpop.f32.mrb[0].mxu0
    %1998 = vmatprep.mubr.bf16.mxu0 0
    %1999 = vmatmul.mubr.bf16.gmra.mrb[0].mxu0 %v1822
    %v2000 = vpop.f32.mrb[0].mxu0
    %v2001 = vadd.f32 0.0, %v2000
    %v2002 = vpop.f32.mrb[0].mxu0
    %v2003 = vpop.f32.mrb[0].mxu0
    %v2004 = vadd.f32 0.0, %v2003
    %v2005 = vpop.f32.mrb[0].mxu0
    %2006 = vmatprep.mubr.bf16.mxu0 0
    %2007 = vmatmul.mubr.bf16.gmra.mrb[0].mxu0 %v1823
    %v2008 = vpop.f32.mrb[0].mxu0
    %v2009 = vadd.f32 0.0, %v2008
    %v2010 = vpop.f32.mrb[0].mxu0
    %v2011 = vpop.f32.mrb[0].mxu0
    %v2012 = vadd.f32 0.0, %v2011
    %v2013 = vpop.f32.mrb[0].mxu0
    %2014 = vmatprep.mubr.bf16.mxu0 0
    %2015 = vmatmul.mubr.bf16.gmra.mrb[0].mxu0 %v1824
    %v2016 = vpop.f32.mrb[0].mxu0
    %v2017 = vadd.f32 0.0, %v2016
    %v2018 = vpop.f32.mrb[0].mxu0
    %v2019 = vpop.f32.mrb[0].mxu0
    %v2020 = vadd.f32 0.0, %v2019
    %v2021 = vpop.f32.mrb[0].mxu0
    %2022 = vmatprep.mubr.bf16.mxu0 0
    %2023 = vmatmul.mubr.bf16.gmra.mrb[0].mxu0 %v1825
    %v2024 = vpop.f32.mrb[0].mxu0
    %v2025 = vadd.f32 0.0, %v2024
    %v2026 = vpop.f32.mrb[0].mxu0
    %v2027 = vpop.f32.mrb[0].mxu0
    %v2028 = vadd.f32 0.0, %v2027
    %v2029 = vpop.f32.mrb[0].mxu0
    %2030 = vmatprep.mubr.bf16.mxu0 0
    %2031 = vmatmul.mubr.bf16.gmra.mrb[0].mxu0 %v1826
    %v2032 = vpop.f32.mrb[0].mxu0
    %v2033 = vadd.f32 0.0, %v2032
    %v2034 = vpop.f32.mrb[0].mxu0
    %v2035 = vpop.f32.mrb[0].mxu0
    %v2036 = vadd.f32 0.0, %v2035
    %v2037 = vpop.f32.mrb[0].mxu0
    %2038 = vmatprep.mubr.bf16.mxu0 0
    %2039 = vmatmul.mubr.bf16.gmra.mrb[0].mxu0 %v1827
    %v2040 = vpop.f32.mrb[0].mxu0
    %v2041 = vadd.f32 0.0, %v2040
    %v2042 = vpop.f32.mrb[0].mxu0
    %v2043 = vpop.f32.mrb[0].mxu0
    %v2044 = vadd.f32 0.0, %v2043
    %v2045 = vpop.f32.mrb[0].mxu0
    %2046 = vmatprep.mubr.bf16.mxu0 0
    %2047 = vmatmul.mubr.bf16.gmra.mrb[0].mxu0 %v1828
    %v2048 = vpop.f32.mrb[0].mxu0
    %v2049 = vadd.f32 0.0, %v2048
    %v2050 = vpop.f32.mrb[0].mxu0
    %v2051 = vpop.f32.mrb[0].mxu0
    %v2052 = vadd.f32 0.0, %v2051
    %v2053 = vpop.f32.mrb[0].mxu0
    %2054 = vdwg.mxu0
    %v2055 = vpack.c.bf16 %v1932, %v1929
    %v2056 = vpack.c.bf16 %v1940, %v1937
    %v2057 = vpack.c.bf16 %v1948, %v1945
    %v2058 = vpack.c.bf16 %v1956, %v1953
    %v2059 = vpack.c.bf16 %v1964, %v1961
    %v2060 = vpack.c.bf16 %v1972, %v1969
    %v2061 = vpack.c.bf16 %v1980, %v1977
    %v2062 = vpack.c.bf16 %v1988, %v1985
    %v2063 = vpack.c.bf16 %v1996, %v1993
    %v2064 = vpack.c.bf16 %v2004, %v2001
    %v2065 = vpack.c.bf16 %v2012, %v2009
    %v2066 = vpack.c.bf16 %v2020, %v2017
    %v2067 = vpack.c.bf16 %v2028, %v2025
    %v2068 = vpack.c.bf16 %v2036, %v2033
    %v2069 = vpack.c.bf16 %v2044, %v2041
    %v2070 = vpack.c.bf16 %v2052, %v2049
    %v2072 = vlaneseq
    %v2073 = vshrl.u32 %v2072, 7
    %v2074 = vsub.s32 0, %v2073
    %v2075 = vrot.slane %v1845, %v2074
    %2077 = vmatprep.subr.bf16.mxu0 0
    %2078 = vmatpush1.bf16.msra.mxu0 %v2055
    %2079 = vmatprep.subr.bf16.mxu0 0
    %2080 = vmatpush1.bf16.msra.mxu0 %v2056
    %2081 = vmatprep.subr.bf16.mxu0 0
    %2082 = vmatpush1.bf16.msra.mxu0 %v2057
    %2083 = vmatprep.subr.bf16.mxu0 0
    %2084 = vmatpush1.bf16.msra.mxu0 %v2058
    %2085 = vmatprep.subr.bf16.mxu0 0
    %2086 = vmatpush1.bf16.msra.mxu0 %v2059
    %2087 = vmatprep.subr.bf16.mxu0 0
    %2088 = vmatpush1.bf16.msra.mxu0 %v2060
    %2089 = vmatprep.subr.bf16.mxu0 0
    %2090 = vmatpush1.bf16.msra.mxu0 %v2061
    %2091 = vmatprep.subr.bf16.mxu0 0
    %2092 = vmatpush1.bf16.msra.mxu0 %v2062
    %2093 = vmatprep.subr.bf16.mxu0 0
    %2094 = vmatpush1.bf16.msra.mxu0 %v2063
    %2095 = vmatprep.subr.bf16.mxu0 0
    %2096 = vmatpush1.bf16.msra.mxu0 %v2064
    %2097 = vmatprep.subr.bf16.mxu0 0
    %2098 = vmatpush1.bf16.msra.mxu0 %v2065
    %2099 = vmatprep.subr.bf16.mxu0 0
    %2100 = vmatpush1.bf16.msra.mxu0 %v2066
    %2101 = vmatprep.subr.bf16.mxu0 0
    %2102 = vmatpush1.bf16.msra.mxu0 %v2067
    %2103 = vmatprep.subr.bf16.mxu0 0
    %2104 = vmatpush1.bf16.msra.mxu0 %v2068
    %2105 = vmatprep.subr.bf16.mxu0 0
    %2106 = vmatpush1.bf16.msra.mxu0 %v2069
    %2107 = vmatprep.subr.bf16.mxu0 0
    %2108 = vmatpush1.bf16.msra.mxu0 %v2070
    %2109 = vmatprep.mubr.bf16.mxu0 %v643
    %2110 = vmatmul.mubr.bf16.gmra.mrb[0].mxu0 %v642
    %v2111 = vpop.f32.mrb[0].mxu0
    %v2112 = vadd.f32 %v2075, %v2111
    %v2113 = vpop.f32.mrb[0].mxu0
    %v2114 = vpop.f32.mrb[0].mxu0
    %v2115 = vadd.f32 %v2075, %v2114
    %v2116 = vpop.f32.mrb[0].mxu0
    %2117 = vmatprep.mubr.bf16.mxu0 %v645
    %2118 = vmatmul.mubr.bf16.gmra.mrb[0].mxu0 %v644
    %v2119 = vpop.f32.mrb[0].mxu0
    %v2120 = vadd.f32 %v2075, %v2119
    %v2121 = vpop.f32.mrb[0].mxu0
    %v2122 = vpop.f32.mrb[0].mxu0
    %v2123 = vadd.f32 %v2075, %v2122
    %v2124 = vpop.f32.mrb[0].mxu0
    %2125 = vmatprep.mubr.bf16.mxu0 %v647
    %2126 = vmatmul.mubr.bf16.gmra.mrb[0].mxu0 %v646
    %v2127 = vpop.f32.mrb[0].mxu0
    %v2128 = vadd.f32 %v2075, %v2127
    %v2129 = vpop.f32.mrb[0].mxu0
    %v2130 = vpop.f32.mrb[0].mxu0
    %v2131 = vadd.f32 %v2075, %v2130
    %v2132 = vpop.f32.mrb[0].mxu0
    %2133 = vmatprep.mubr.bf16.mxu0 %v649
    %2134 = vmatmul.mubr.bf16.gmra.mrb[0].mxu0 %v648
    %v2135 = vpop.f32.mrb[0].mxu0
    %v2136 = vadd.f32 %v2075, %v2135
    %v2137 = vpop.f32.mrb[0].mxu0
    %v2138 = vpop.f32.mrb[0].mxu0
    %v2139 = vadd.f32 %v2075, %v2138
    %v2140 = vpop.f32.mrb[0].mxu0
    %2141 = vmatprep.mubr.bf16.mxu0 %v651
    %2142 = vmatmul.mubr.bf16.gmra.mrb[0].mxu0 %v650
    %v2143 = vpop.f32.mrb[0].mxu0
    %v2144 = vadd.f32 %v2075, %v2143
    %v2145 = vpop.f32.mrb[0].mxu0
    %v2146 = vpop.f32.mrb[0].mxu0
    %v2147 = vadd.f32 %v2075, %v2146
    %v2148 = vpop.f32.mrb[0].mxu0
    %2149 = vmatprep.mubr.bf16.mxu0 %v653
    %2150 = vmatmul.mubr.bf16.gmra.mrb[0].mxu0 %v652
    %v2151 = vpop.f32.mrb[0].mxu0
    %v2152 = vadd.f32 %v2075, %v2151
    %v2153 = vpop.f32.mrb[0].mxu0
    %v2154 = vpop.f32.mrb[0].mxu0
    %v2155 = vadd.f32 %v2075, %v2154
    %v2156 = vpop.f32.mrb[0].mxu0
    %2157 = vmatprep.mubr.bf16.mxu0 %v655
    %2158 = vmatmul.mubr.bf16.gmra.mrb[0].mxu0 %v654
    %v2159 = vpop.f32.mrb[0].mxu0
    %v2160 = vadd.f32 %v2075, %v2159
    %v2161 = vpop.f32.mrb[0].mxu0
    %v2162 = vpop.f32.mrb[0].mxu0
    %v2163 = vadd.f32 %v2075, %v2162
    %v2164 = vpop.f32.mrb[0].mxu0
    %2165 = vmatprep.mubr.bf16.mxu0 %v657
    %2166 = vmatmul.mubr.bf16.gmra.mrb[0].mxu0 %v656
    %v2167 = vpop.f32.mrb[0].mxu0
    %v2168 = vadd.f32 %v2075, %v2167
    %v2169 = vpop.f32.mrb[0].mxu0
    %v2170 = vpop.f32.mrb[0].mxu0
    %v2171 = vadd.f32 %v2075, %v2170
    %v2172 = vpop.f32.mrb[0].mxu0
    %2173 = vmatprep.mubr.bf16.mxu0 %v659
    %2174 = vmatmul.mubr.bf16.gmra.mrb[0].mxu0 %v658
    %v2175 = vpop.f32.mrb[0].mxu0
    %v2176 = vadd.f32 %v2075, %v2175
    %v2177 = vpop.f32.mrb[0].mxu0
    %v2178 = vpop.f32.mrb[0].mxu0
    %v2179 = vadd.f32 %v2075, %v2178
    %v2180 = vpop.f32.mrb[0].mxu0
    %2181 = vmatprep.mubr.bf16.mxu0 %v661
    %2182 = vmatmul.mubr.bf16.gmra.mrb[0].mxu0 %v660
    %v2183 = vpop.f32.mrb[0].mxu0
    %v2184 = vadd.f32 %v2075, %v2183
    %v2185 = vpop.f32.mrb[0].mxu0
    %v2186 = vpop.f32.mrb[0].mxu0
    %v2187 = vadd.f32 %v2075, %v2186
    %v2188 = vpop.f32.mrb[0].mxu0
    %2189 = vmatprep.mubr.bf16.mxu0 %v663
    %2190 = vmatmul.mubr.bf16.gmra.mrb[0].mxu0 %v662
    %v2191 = vpop.f32.mrb[0].mxu0
    %v2192 = vadd.f32 %v2075, %v2191
    %v2193 = vpop.f32.mrb[0].mxu0
    %v2194 = vpop.f32.mrb[0].mxu0
    %v2195 = vadd.f32 %v2075, %v2194
    %v2196 = vpop.f32.mrb[0].mxu0
    %2197 = vmatprep.mubr.bf16.mxu0 %v665
    %2198 = vmatmul.mubr.bf16.gmra.mrb[0].mxu0 %v664
    %v2199 = vpop.f32.mrb[0].mxu0
    %v2200 = vadd.f32 %v2075, %v2199
    %v2201 = vpop.f32.mrb[0].mxu0
    %v2202 = vpop.f32.mrb[0].mxu0
    %v2203 = vadd.f32 %v2075, %v2202
    %v2204 = vpop.f32.mrb[0].mxu0
    %2205 = vmatprep.mubr.bf16.mxu0 %v667
    %2206 = vmatmul.mubr.bf16.gmra.mrb[0].mxu0 %v666
    %v2207 = vpop.f32.mrb[0].mxu0
    %v2208 = vadd.f32 %v2075, %v2207
    %v2209 = vpop.f32.mrb[0].mxu0
    %v2210 = vpop.f32.mrb[0].mxu0
    %v2211 = vadd.f32 %v2075, %v2210
    %v2212 = vpop.f32.mrb[0].mxu0
    %2213 = vmatprep.mubr.bf16.mxu0 %v669
    %2214 = vmatmul.mubr.bf16.gmra.mrb[0].mxu0 %v668
    %v2215 = vpop.f32.mrb[0].mxu0
    %v2216 = vadd.f32 %v2075, %v2215
    %v2217 = vpop.f32.mrb[0].mxu0
    %v2218 = vpop.f32.mrb[0].mxu0
    %v2219 = vadd.f32 %v2075, %v2218
    %v2220 = vpop.f32.mrb[0].mxu0
    %2221 = vmatprep.mubr.bf16.mxu0 %v671
    %2222 = vmatmul.mubr.bf16.gmra.mrb[0].mxu0 %v670
    %v2223 = vpop.f32.mrb[0].mxu0
    %v2224 = vadd.f32 %v2075, %v2223
    %v2225 = vpop.f32.mrb[0].mxu0
    %v2226 = vpop.f32.mrb[0].mxu0
    %v2227 = vadd.f32 %v2075, %v2226
    %v2228 = vpop.f32.mrb[0].mxu0
    %2229 = vmatprep.mubr.bf16.mxu0 %v673
    %2230 = vmatmul.mubr.bf16.gmra.mrb[0].mxu0 %v672
    %v2231 = vpop.f32.mrb[0].mxu0
    %v2232 = vadd.f32 %v2075, %v2231
    %v2233 = vpop.f32.mrb[0].mxu0
    %v2234 = vpop.f32.mrb[0].mxu0
    %v2235 = vadd.f32 %v2075, %v2234
    %v2236 = vpop.f32.mrb[0].mxu0
    %2237 = vdwg.mxu0
    %v2238 = vmax.f32 %v2112, 0.0
    %v2239 = vmax.f32 %v2115, 0.0
    %v2240 = vmax.f32 %v2120, 0.0
    %v2241 = vmax.f32 %v2123, 0.0
    %v2242 = vmax.f32 %v2128, 0.0
    %v2243 = vmax.f32 %v2131, 0.0
    %v2244 = vmax.f32 %v2136, 0.0
    %v2245 = vmax.f32 %v2139, 0.0
    %v2246 = vmax.f32 %v2144, 0.0
    %v2247 = vmax.f32 %v2147, 0.0
    %v2248 = vmax.f32 %v2152, 0.0
    %v2249 = vmax.f32 %v2155, 0.0
    %v2250 = vmax.f32 %v2160, 0.0
    %v2251 = vmax.f32 %v2163, 0.0
    %v2252 = vmax.f32 %v2168, 0.0
    %v2253 = vmax.f32 %v2171, 0.0
    %v2254 = vmax.f32 %v2176, 0.0
    %v2255 = vmax.f32 %v2179, 0.0
    %v2256 = vmax.f32 %v2184, 0.0
    %v2257 = vmax.f32 %v2187, 0.0
    %v2258 = vmax.f32 %v2192, 0.0
    %v2259 = vmax.f32 %v2195, 0.0
    %v2260 = vmax.f32 %v2200, 0.0
    %v2261 = vmax.f32 %v2203, 0.0
    %v2262 = vmax.f32 %v2208, 0.0
    %v2263 = vmax.f32 %v2211, 0.0
    %v2264 = vmax.f32 %v2216, 0.0
    %v2265 = vmax.f32 %v2219, 0.0
    %v2266 = vmax.f32 %v2224, 0.0
    %v2267 = vmax.f32 %v2227, 0.0
    %v2268 = vmax.f32 %v2232, 0.0
    %v2269 = vmax.f32 %v2235, 0.0
    %v2270 = vpack.c.bf16 %v2239, %v2238
    %v2271 = vpack.c.bf16 %v2241, %v2240
    %v2272 = vpack.c.bf16 %v2243, %v2242
    %v2273 = vpack.c.bf16 %v2245, %v2244
    %v2274 = vpack.c.bf16 %v2247, %v2246
    %v2275 = vpack.c.bf16 %v2249, %v2248
    %v2276 = vpack.c.bf16 %v2251, %v2250
    %v2277 = vpack.c.bf16 %v2253, %v2252
    %v2278 = vpack.c.bf16 %v2255, %v2254
    %v2279 = vpack.c.bf16 %v2257, %v2256
    %v2280 = vpack.c.bf16 %v2259, %v2258
    %v2281 = vpack.c.bf16 %v2261, %v2260
    %v2282 = vpack.c.bf16 %v2263, %v2262
    %v2283 = vpack.c.bf16 %v2265, %v2264
    %v2284 = vpack.c.bf16 %v2267, %v2266
    %v2285 = vpack.c.bf16 %v2269, %v2268
    %v2286 = vld [vmem:[#allocation13] sm:$0xf]
    %v2287 = vld [vmem:[#allocation13 + $0x4] sm:$0xf]
    %v2288 = vld [vmem:[#allocation13 + $0x8] sm:$0xf]
    %v2289 = vld [vmem:[#allocation13 + $0xc] sm:$0xf]
    %v2290 = vld [vmem:[#allocation13 + $0x10] sm:$0xf]
    %v2291 = vld [vmem:[#allocation13 + $0x14] sm:$0xf]
    %v2292 = vld [vmem:[#allocation13 + $0x18] sm:$0xf]
    %v2293 = vld [vmem:[#allocation13 + $0x1c] sm:$0xf]
    %v2294 = vld [vmem:[#allocation13 + $0x20] sm:$0xf]
    %v2295 = vld [vmem:[#allocation13 + $0x24] sm:$0xf]
    %v2296 = vld [vmem:[#allocation13 + $0x28] sm:$0xf]
    %v2297 = vld [vmem:[#allocation13 + $0x2c] sm:$0xf]
    %v2298 = vld [vmem:[#allocation13 + $0x30] sm:$0xf]
    %v2299 = vld [vmem:[#allocation13 + $0x34] sm:$0xf]
    %v2300 = vld [vmem:[#allocation13 + $0x38] sm:$0xf]
    %v2301 = vld [vmem:[#allocation13 + $0x3c] sm:$0xf]
    %v2302 = vld [vmem:[%s11] sm:$0x1]
    %v2304 = vlaneseq
    %v2305 = vshrl.u32 %v2304, 7
    %v2306 = vsub.s32 0, %v2305
    %v2307 = vrot.slane %v2302, %v2306
    %v2325 = vunpack.c.l.b16 %v2286
    %v2326 = vunpack.c.l.b16 %v2287
    %v2327 = vunpack.c.l.b16 %v2288
    %v2328 = vunpack.c.l.b16 %v2289
    %v2329 = vunpack.c.l.b16 %v2290
    %v2330 = vunpack.c.l.b16 %v2291
    %v2331 = vunpack.c.l.b16 %v2292
    %v2332 = vunpack.c.l.b16 %v2293
    %v2333 = vunpack.c.l.b16 %v2294
    %v2334 = vunpack.c.l.b16 %v2295
    %v2335 = vunpack.c.l.b16 %v2296
    %v2336 = vunpack.c.l.b16 %v2297
    %v2337 = vunpack.c.l.b16 %v2298
    %v2338 = vunpack.c.l.b16 %v2299
    %v2339 = vunpack.c.l.b16 %v2300
    %v2340 = vunpack.c.l.b16 %v2301
    %v2341 = vpack.c.b16 %v2326, %v2325
    %v2342 = vpack.c.b16 %v2328, %v2327
    %v2343 = vpack.c.b16 %v2330, %v2329
    %v2344 = vpack.c.b16 %v2332, %v2331
    %v2345 = vpack.c.b16 %v2334, %v2333
    %v2346 = vpack.c.b16 %v2336, %v2335
    %v2347 = vpack.c.b16 %v2338, %v2337
    %v2348 = vpack.c.b16 %v2340, %v2339
    %2357 = vmatprep.subr.bf16.mxu0 0
    %2358 = vmatpush1.bf16.msra.mxu0 %v2341
    %2359 = vmatprep.subr.bf16.mxu0 0
    %2360 = vmatpush1.bf16.msra.mxu0 %v2342
    %2361 = vmatprep.subr.bf16.mxu0 0
    %2362 = vmatpush1.bf16.msra.mxu0 %v2343
    %2363 = vmatprep.subr.bf16.mxu0 0
    %2364 = vmatpush1.bf16.msra.mxu0 %v2344
    %2365 = vmatprep.subr.bf16.mxu0 0
    %2366 = vmatpush1.bf16.msra.mxu0 %v2345
    %2367 = vmatprep.subr.bf16.mxu0 0
    %2368 = vmatpush1.bf16.msra.mxu0 %v2346
    %2369 = vmatprep.subr.bf16.mxu0 0
    %2370 = vmatpush1.bf16.msra.mxu0 %v2347
    %2371 = vmatprep.subr.bf16.mxu0 0
    %2372 = vmatpush1.bf16.msra.mxu0 %v2348
    %2373 = vmatprep.subr.bf16.mxu0 0
    %2374 = vmatpush1.bf16.msra.mxu0 0
    %2375 = vmatprep.subr.bf16.mxu0 0
    %2376 = vmatpush1.bf16.msra.mxu0 0
    %2377 = vmatprep.subr.bf16.mxu0 0
    %2378 = vmatpush1.bf16.msra.mxu0 0
    %2379 = vmatprep.subr.bf16.mxu0 0
    %2380 = vmatpush1.bf16.msra.mxu0 0
    %2381 = vmatprep.subr.bf16.mxu0 0
    %2382 = vmatpush1.bf16.msra.mxu0 0
    %2383 = vmatprep.subr.bf16.mxu0 0
    %2384 = vmatpush1.bf16.msra.mxu0 0
    %2385 = vmatprep.subr.bf16.mxu0 0
    %2386 = vmatpush1.bf16.msra.mxu0 0
    %2387 = vmatprep.subr.bf16.mxu0 0
    %2388 = vmatpush1.bf16.msra.mxu0 0
    %2389 = vmatprep.mubr.bf16.mxu0 0
    %2390 = vmatmul.mubr.bf16.gmra.mrb[0].mxu0 %v2270
    %v2391 = vpop.f32.mrb[0].mxu0
    %v2392 = vadd.f32 %v2307, %v2391
    %v2393 = vpop.f32.mrb[0].mxu0
    %v2394 = vpop.f32.mrb[0].mxu0
    %v2395 = vadd.f32 %v2307, %v2394
    %v2396 = vpop.f32.mrb[0].mxu0
    %2397 = vmatprep.mubr.bf16.mxu0 0
    %2398 = vmatmul.mubr.bf16.gmra.mrb[0].mxu0 %v2271
    %v2399 = vpop.f32.mrb[0].mxu0
    %v2400 = vadd.f32 %v2307, %v2399
    %v2401 = vpop.f32.mrb[0].mxu0
    %v2402 = vpop.f32.mrb[0].mxu0
    %v2403 = vadd.f32 %v2307, %v2402
    %v2404 = vpop.f32.mrb[0].mxu0
    %2405 = vmatprep.mubr.bf16.mxu0 0
    %2406 = vmatmul.mubr.bf16.gmra.mrb[0].mxu0 %v2272
    %v2407 = vpop.f32.mrb[0].mxu0
    %v2408 = vadd.f32 %v2307, %v2407
    %v2409 = vpop.f32.mrb[0].mxu0
    %v2410 = vpop.f32.mrb[0].mxu0
    %v2411 = vadd.f32 %v2307, %v2410
    %v2412 = vpop.f32.mrb[0].mxu0
    %2413 = vmatprep.mubr.bf16.mxu0 0
    %2414 = vmatmul.mubr.bf16.gmra.mrb[0].mxu0 %v2273
    %v2415 = vpop.f32.mrb[0].mxu0
    %v2416 = vadd.f32 %v2307, %v2415
    %v2417 = vpop.f32.mrb[0].mxu0
    %v2418 = vpop.f32.mrb[0].mxu0
    %v2419 = vadd.f32 %v2307, %v2418
    %v2420 = vpop.f32.mrb[0].mxu0
    %2421 = vmatprep.mubr.bf16.mxu0 0
    %2422 = vmatmul.mubr.bf16.gmra.mrb[0].mxu0 %v2274
    %v2423 = vpop.f32.mrb[0].mxu0
    %v2424 = vadd.f32 %v2307, %v2423
    %v2425 = vpop.f32.mrb[0].mxu0
    %v2426 = vpop.f32.mrb[0].mxu0
    %v2427 = vadd.f32 %v2307, %v2426
    %v2428 = vpop.f32.mrb[0].mxu0
    %2429 = vmatprep.mubr.bf16.mxu0 0
    %2430 = vmatmul.mubr.bf16.gmra.mrb[0].mxu0 %v2275
    %v2431 = vpop.f32.mrb[0].mxu0
    %v2432 = vadd.f32 %v2307, %v2431
    %v2433 = vpop.f32.mrb[0].mxu0
    %v2434 = vpop.f32.mrb[0].mxu0
    %v2435 = vadd.f32 %v2307, %v2434
    %v2436 = vpop.f32.mrb[0].mxu0
    %2437 = vmatprep.mubr.bf16.mxu0 0
    %2438 = vmatmul.mubr.bf16.gmra.mrb[0].mxu0 %v2276
    %v2439 = vpop.f32.mrb[0].mxu0
    %v2440 = vadd.f32 %v2307, %v2439
    %v2441 = vpop.f32.mrb[0].mxu0
    %v2442 = vpop.f32.mrb[0].mxu0
    %v2443 = vadd.f32 %v2307, %v2442
    %v2444 = vpop.f32.mrb[0].mxu0
    %2445 = vmatprep.mubr.bf16.mxu0 0
    %2446 = vmatmul.mubr.bf16.gmra.mrb[0].mxu0 %v2277
    %v2447 = vpop.f32.mrb[0].mxu0
    %v2448 = vadd.f32 %v2307, %v2447
    %v2449 = vpop.f32.mrb[0].mxu0
    %v2450 = vpop.f32.mrb[0].mxu0
    %v2451 = vadd.f32 %v2307, %v2450
    %v2452 = vpop.f32.mrb[0].mxu0
    %2453 = vmatprep.mubr.bf16.mxu0 0
    %2454 = vmatmul.mubr.bf16.gmra.mrb[0].mxu0 %v2278
    %v2455 = vpop.f32.mrb[0].mxu0
    %v2456 = vadd.f32 %v2307, %v2455
    %v2457 = vpop.f32.mrb[0].mxu0
    %v2458 = vpop.f32.mrb[0].mxu0
    %v2459 = vadd.f32 %v2307, %v2458
    %v2460 = vpop.f32.mrb[0].mxu0
    %2461 = vmatprep.mubr.bf16.mxu0 0
    %2462 = vmatmul.mubr.bf16.gmra.mrb[0].mxu0 %v2279
    %v2463 = vpop.f32.mrb[0].mxu0
    %v2464 = vadd.f32 %v2307, %v2463
    %v2465 = vpop.f32.mrb[0].mxu0
    %v2466 = vpop.f32.mrb[0].mxu0
    %v2467 = vadd.f32 %v2307, %v2466
    %v2468 = vpop.f32.mrb[0].mxu0
    %2469 = vmatprep.mubr.bf16.mxu0 0
    %2470 = vmatmul.mubr.bf16.gmra.mrb[0].mxu0 %v2280
    %v2471 = vpop.f32.mrb[0].mxu0
    %v2472 = vadd.f32 %v2307, %v2471
    %v2473 = vpop.f32.mrb[0].mxu0
    %v2474 = vpop.f32.mrb[0].mxu0
    %v2475 = vadd.f32 %v2307, %v2474
    %v2476 = vpop.f32.mrb[0].mxu0
    %2477 = vmatprep.mubr.bf16.mxu0 0
    %2478 = vmatmul.mubr.bf16.gmra.mrb[0].mxu0 %v2281
    %v2479 = vpop.f32.mrb[0].mxu0
    %v2480 = vadd.f32 %v2307, %v2479
    %v2481 = vpop.f32.mrb[0].mxu0
    %v2482 = vpop.f32.mrb[0].mxu0
    %v2483 = vadd.f32 %v2307, %v2482
    %v2484 = vpop.f32.mrb[0].mxu0
    %2485 = vmatprep.mubr.bf16.mxu0 0
    %2486 = vmatmul.mubr.bf16.gmra.mrb[0].mxu0 %v2282
    %v2487 = vpop.f32.mrb[0].mxu0
    %v2488 = vadd.f32 %v2307, %v2487
    %v2489 = vpop.f32.mrb[0].mxu0
    %v2490 = vpop.f32.mrb[0].mxu0
    %v2491 = vadd.f32 %v2307, %v2490
    %v2492 = vpop.f32.mrb[0].mxu0
    %2493 = vmatprep.mubr.bf16.mxu0 0
    %2494 = vmatmul.mubr.bf16.gmra.mrb[0].mxu0 %v2283
    %v2495 = vpop.f32.mrb[0].mxu0
    %v2496 = vadd.f32 %v2307, %v2495
    %v2497 = vpop.f32.mrb[0].mxu0
    %v2498 = vpop.f32.mrb[0].mxu0
    %v2499 = vadd.f32 %v2307, %v2498
    %v2500 = vpop.f32.mrb[0].mxu0
    %2501 = vmatprep.mubr.bf16.mxu0 0
    %2502 = vmatmul.mubr.bf16.gmra.mrb[0].mxu0 %v2284
    %v2503 = vpop.f32.mrb[0].mxu0
    %v2504 = vadd.f32 %v2307, %v2503
    %v2505 = vpop.f32.mrb[0].mxu0
    %v2506 = vpop.f32.mrb[0].mxu0
    %v2507 = vadd.f32 %v2307, %v2506
    %v2508 = vpop.f32.mrb[0].mxu0
    %2509 = vmatprep.mubr.bf16.mxu0 0
    %2510 = vmatmul.mubr.bf16.gmra.mrb[0].mxu0 %v2285
    %v2511 = vpop.f32.mrb[0].mxu0
    %v2512 = vadd.f32 %v2307, %v2511
    %v2513 = vpop.f32.mrb[0].mxu0
    %v2514 = vpop.f32.mrb[0].mxu0
    %v2515 = vadd.f32 %v2307, %v2514
    %v2516 = vpop.f32.mrb[0].mxu0
    %2517 = vdwg.mxu0
    %2518 = vst [vmem:[#allocation14] sm:$0xff] %v2392
    %2519 = vst [vmem:[#allocation14 + $0x8] sm:$0xff] %v2395
    %2520 = vst [vmem:[#allocation14 + $0x10] sm:$0xff] %v2400
    %2521 = vst [vmem:[#allocation14 + $0x18] sm:$0xff] %v2403
    %2522 = vst [vmem:[#allocation14 + $0x20] sm:$0xff] %v2408
    %2523 = vst [vmem:[#allocation14 + $0x28] sm:$0xff] %v2411
    %2524 = vst [vmem:[#allocation14 + $0x30] sm:$0xff] %v2416
    %2525 = vst [vmem:[#allocation14 + $0x38] sm:$0xff] %v2419
    %2526 = vst [vmem:[#allocation14 + $0x40] sm:$0xff] %v2424
    %2527 = vst [vmem:[#allocation14 + $0x48] sm:$0xff] %v2427
    %2528 = vst [vmem:[#allocation14 + $0x50] sm:$0xff] %v2432
    %2529 = vst [vmem:[#allocation14 + $0x58] sm:$0xff] %v2435
    %2530 = vst [vmem:[#allocation14 + $0x60] sm:$0xff] %v2440
    %2531 = vst [vmem:[#allocation14 + $0x68] sm:$0xff] %v2443
    %2532 = vst [vmem:[#allocation14 + $0x70] sm:$0xff] %v2448
    %2533 = vst [vmem:[#allocation14 + $0x78] sm:$0xff] %v2451
    %2534 = vst [vmem:[#allocation14 + $0x80] sm:$0xff] %v2456
    %2535 = vst [vmem:[#allocation14 + $0x88] sm:$0xff] %v2459
    %2536 = vst [vmem:[#allocation14 + $0x90] sm:$0xff] %v2464
    %2537 = vst [vmem:[#allocation14 + $0x98] sm:$0xff] %v2467
    %2538 = vst [vmem:[#allocation14 + $0xa0] sm:$0xff] %v2472
    %2539 = vst [vmem:[#allocation14 + $0xa8] sm:$0xff] %v2475
    %2540 = vst [vmem:[#allocation14 + $0xb0] sm:$0xff] %v2480
    %2541 = vst [vmem:[#allocation14 + $0xb8] sm:$0xff] %v2483
    %2542 = vst [vmem:[#allocation14 + $0xc0] sm:$0xff] %v2488
    %2543 = vst [vmem:[#allocation14 + $0xc8] sm:$0xff] %v2491
    %2544 = vst [vmem:[#allocation14 + $0xd0] sm:$0xff] %v2496
    %2545 = vst [vmem:[#allocation14 + $0xd8] sm:$0xff] %v2499
    %2546 = vst [vmem:[#allocation14 + $0xe0] sm:$0xff] %v2504
    %2547 = vst [vmem:[#allocation14 + $0xe8] sm:$0xff] %v2507
    %2548 = vst [vmem:[#allocation14 + $0xf0] sm:$0xff] %v2512
    %2549 = vst [vmem:[#allocation14 + $0xf8] sm:$0xff] %v2515
    // Predicated region
    $region78: #{tpu_custom_call.1} parent=1 // pred_check
      _
    $region79: #{tpu_custom_call.1} parent=1 // pred_check_branch
      %2551 = sbr.rel (0) target = $region81
    $region80: #{tpu_custom_call.1} parent=1 // pred_region
      %s2553 = ssub.s32 4096, 4096
      %2554 = vsyncadd [#allocation4], %s2553
      %s2555 = sshll.u32 [#allocation14], 4
      %s2556 = int_to_ptr.vmem [resolvable:$true] %s2555
      %2561 = dma.vmem_to_hbm [thread:$0]  %s2556, 4096, %s12, [#allocation4], 128, 128, 8
    $region81: #{tpu_custom_call.1} parent=1 // pred_fallthru
      _
    // Predicated region
    $region82: #{tpu_custom_call.1} parent=1 // pred_check
      _
    $region83: #{tpu_custom_call.1} parent=1 // pred_check_branch
      %2563 = sbr.rel (0) target = $region85
    $region84: #{tpu_custom_call.1} parent=1 // pred_region
      %2564 = dma.done [#allocation4], 4096
    $region85: #{tpu_custom_call.1} parent=1 // pred_fallthru
      _
    %2565 = vsyncpa [#allocation3], 1
    %2566 = vsyncpa [#allocation6], 1
    %2567 = vsyncpa [#allocation9], 1
    %2568 = vsyncpa [#allocation12], 1
    %2569 = vsyncpa [#allocation4], 1

</llo_original>
